<compile_context>
chip_gen: v6e
topology: v6e:2x2x1
jax: 0.10.0
libtpu: 0.0.40
codegen_flags: <defaults>
</compile_context>

<pallas_src>
import functools
import math

import jax
import jax.numpy as jnp
from jax.experimental import pallas as pl
from jax.experimental.pallas import tpu as pltpu

_SQRT2 = math.sqrt(2.0)
_NORM_EPS = 1e-12  # guards zero/constant rows (e.g. zero-padded final rows)


def _cwn_matmul(x_f32, w_f32, compute_dtype):
    """y = x @ CWN(w).T without materializing CWN(w).

    CWN(w) = (w - mean) / ||w - mean||_2  (per output row), folded as
        y = (x @ w.T - sum(x, -1, keepdims) * mean.T) * inv_norm.T
    with  mean     = sum(w, -1) / I
          inv_norm = rsqrt(sum(w^2, -1) - I * mean^2 + eps)
    Stats are computed in f32; only the MXU operands use compute_dtype.
    """
    i_dim = w_f32.shape[1]
    row_sum = jnp.sum(w_f32, axis=1, keepdims=True)            # (O, 1)
    mean = row_sum * (1.0 / i_dim)                             # (O, 1)
    sumsq = jnp.sum(w_f32 * w_f32, axis=1, keepdims=True)      # (O, 1)
    centred_sumsq = sumsq - row_sum * mean                     # = sumsq - I*mean^2
    inv_norm = jax.lax.rsqrt(centred_sumsq + _NORM_EPS)        # (O, 1)  (EUP)
    x_rowsum = jnp.sum(x_f32, axis=1, keepdims=True)           # (B, 1)

    y = jax.lax.dot_general(
        x_f32.astype(compute_dtype), w_f32.astype(compute_dtype),
        dimension_numbers=(((1,), (1,)), ((), ())),
        preferred_element_type=jnp.float32)                    # (B, O) f32 acc
    return (y - x_rowsum * mean.T) * inv_norm.T


def _relu_gain(y):
    return jnp.maximum(y, 0.0) * _SQRT2


def _cwn_net_kernel(x_ref, w_init_ref, w_hid_ref, w_fin_ref, o_ref, h_ref,
                    *, n_hidden, compute_dtype):
    """One grid step == one hidden layer; prologue/epilogue fold initial/final."""
    l = pl.program_id(0)

    # Prologue (step 0): initial 784 -> width layer, relu * sqrt(2).
    @pl.when(l == 0)
    def _():
        x = x_ref[...].astype(jnp.float32)
        w0 = w_init_ref[...].astype(jnp.float32)
        h_ref[...] = _relu_gain(_cwn_matmul(x, w0, compute_dtype))

    # Hidden layer l (streamed, double-buffered weight block), relu * sqrt(2).
    wl = w_hid_ref[0].astype(jnp.float32)
    h_ref[...] = _relu_gain(_cwn_matmul(h_ref[...], wl, compute_dtype))

    # Epilogue (last step): final width -> n_classes (lane-dense padded), no relu.
    @pl.when(l == n_hidden - 1)
    def _():
        wf = w_fin_ref[...].astype(jnp.float32)
        o_ref[...] = _cwn_matmul(h_ref[...], wf, compute_dtype).astype(o_ref.dtype)


@functools.partial(jax.jit, static_argnames=("compute_dtype",))
def cwnnet_forward(x, w_initial, w_hidden_stacked, w_final,
                   *, compute_dtype=jnp.bfloat16):
    """Reproduces CWNNet.forward with a single fused Pallas kernel."""
    B, in_features = x.shape
    width, in_features_w = w_initial.shape
    n_hidden, width_h, width_h2 = w_hidden_stacked.shape
    n_classes, width_f = w_final.shape
    assert in_features == in_features_w, (x.shape, w_initial.shape)
    assert width == width_h == width_h2 == width_f
    assert n_hidden >= 1, "fused kernel assumes depth >= 3"
    # TODO(synk): for very large batches, add a leading 'parallel' batch grid
    # axis so v7x's two TensorCores can split the work.

    # Lane-dense output: pad the class dim up to a multiple of 128, slice after.
    o_pad = ((n_classes + 127) // 128) * 128
    w_final_padded = jnp.zeros((o_pad, width), w_final.dtype)
    w_final_padded = w_final_padded.at[:n_classes].set(w_final)

    kernel = functools.partial(
        _cwn_net_kernel, n_hidden=n_hidden, compute_dtype=compute_dtype)

    out_padded = pl.pallas_call(
        kernel,
        out_shape=jax.ShapeDtypeStruct((B, o_pad), jnp.float32),
        grid=(n_hidden,),
        in_specs=[
            pl.BlockSpec((B, in_features), lambda l: (0, 0)),       # x (resident)
            pl.BlockSpec((width, in_features), lambda l: (0, 0)),   # w_initial
            pl.BlockSpec((1, width, width), lambda l: (l, 0, 0)),   # streamed W_l
            pl.BlockSpec((o_pad, width), lambda l: (0, 0)),         # w_final (pad)
        ],
        out_specs=pl.BlockSpec((B, o_pad), lambda l: (0, 0)),
        scratch_shapes=[pltpu.VMEM((B, width), jnp.float32)],       # persistent h
        compiler_params=pltpu.CompilerParams(
            dimension_semantics=("arbitrary",),      # layer axis carries h
            vmem_limit_bytes=48 * 1024 * 1024,
        ),
    )(x, w_initial, w_hidden_stacked, w_final_padded)

    return out_padded[:, :n_classes]


def init_cwnnet_params(key, depth, width, in_features=784, n_classes=10):
    """Deterministic parameter init matching the nn.Linear shapes in __init__."""
    n_hidden = depth - 2
    keys = jax.random.split(key, n_hidden + 2)

    def kaiming_uniform(k, out_f, in_f):
        bound = math.sqrt(1.0 / in_f) * math.sqrt(3.0)
        return jax.random.uniform(
            k, (out_f, in_f), jnp.float32, minval=-bound, maxval=bound)

    w_initial = kaiming_uniform(keys[0], width, in_features)       # (width, 784)
    w_hidden = [kaiming_uniform(keys[1 + i], width, width)
                for i in range(n_hidden)]                           # (width, width)
    w_final = kaiming_uniform(keys[-1], n_classes, width)           # (10, width)
    return w_initial, w_hidden, w_final


if __name__ == "__main__":
    depth = 5
    width = 128          # small width for the synthetic run (module default is 784)
    in_features = 784    # fixed by nn.Linear(784, width)
    batch = 8
    n_classes = 10

    key = jax.random.PRNGKey(0)
    k_x, k_p = jax.random.split(key)

    x = jax.random.normal(k_x, (batch, in_features), jnp.float32)
    w_initial, w_hidden, w_final = init_cwnnet_params(
        k_p, depth, width, in_features, n_classes)
    w_hidden_stacked = jnp.stack(w_hidden)       # (depth-2, width, width)

    # Performance path: bf16 MXU operands, f32 accumulation, f32 CWN stats.
    out_bf16 = cwnnet_forward(x, w_initial, w_hidden_stacked, w_final,
                              compute_dtype=jnp.bfloat16)
    out_bf16 = jax.block_until_ready(out_bf16)
    assert out_bf16.shape == (batch, n_classes), out_bf16.shape

    # Full-f32 path for a tight numerical check against the reference.
    out_f32 = cwnnet_forward(x, w_initial, w_hidden_stacked, w_final,
                             compute_dtype=jnp.float32)
    out_f32 = jax.block_until_ready(out_f32)

    # Pure-JAX reference (two-pass CWN, exactly like the PyTorch module).
    def cwn_ref(w):
        c = w - w.mean(axis=1, keepdims=True)
        return c / jnp.linalg.norm(c, axis=1, keepdims=True)

    h_ref = jnp.maximum(x @ cwn_ref(w_initial).T, 0.0) * _SQRT2
    for w in w_hidden:
        h_ref = jnp.maximum(h_ref @ cwn_ref(w).T, 0.0) * _SQRT2
    out_ref = h_ref @ cwn_ref(w_final).T

    assert jnp.allclose(out_f32, out_ref, atol=1e-3, rtol=1e-3), (
        "f32 max abs err", float(jnp.max(jnp.abs(out_f32 - out_ref))))
    assert jnp.allclose(out_bf16, out_ref, atol=5e-2, rtol=5e-2), (
        "bf16 max abs err", float(jnp.max(jnp.abs(out_bf16 - out_ref))))
    print("KERNEL_OK")
</pallas_src>

<mosaic_0001>
module attributes {stable_mosaic.version = 11 : i64} {
  func.func @_cwn_net_kernel(%arg0: i32, %arg1: memref<8x784xf32, #tpu.memory_space<vmem>>, %arg2: memref<128x784xf32, #tpu.memory_space<vmem>>, %arg3: memref<1x128x128xf32, #tpu.memory_space<vmem>>, %arg4: memref<128x128xf32, #tpu.memory_space<vmem>>, %arg5: memref<8x128xf32, #tpu.memory_space<vmem>>, %arg6: memref<8x128xf32, #tpu.memory_space<vmem>>) attributes {dimension_semantics = [#tpu.dimension_semantics<arbitrary>], iteration_bounds = array<i64: 3>, scalar_prefetch = 0 : i64, scratch_operands = 1 : i64, tpu.core_type = #tpu.core_type<tc>, window_params = [{pipeline_mode = #tpu.pipeline_mode<synchronous>, transform_indices = @transform_0, window_bounds = array<i64: 8, 784>}, {pipeline_mode = #tpu.pipeline_mode<synchronous>, transform_indices = @transform_1, window_bounds = array<i64: 128, 784>}, {transform_indices = @transform_2, window_bounds = array<i64: 1, 128, 128>}, {pipeline_mode = #tpu.pipeline_mode<synchronous>, transform_indices = @transform_3, window_bounds = array<i64: 128, 128>}, {pipeline_mode = #tpu.pipeline_mode<synchronous>, transform_indices = @transform_4, window_bounds = array<i64: 8, 128>}]} {
    %c0_i32 = arith.constant 0 : i32
    %0 = arith.cmpi eq, %arg0, %c0_i32 : i32
    %1 = arith.extui %0 : i1 to i32
    %c0_i32_0 = arith.constant 0 : i32
    %2 = arith.cmpi ne, %1, %c0_i32_0 : i32
    scf.if %2 {
      %c0_15 = arith.constant 0 : index
      %c0_16 = arith.constant 0 : index
      %39 = vector.load %arg1[%c0_15, %c0_16] : memref<8x784xf32, #tpu.memory_space<vmem>>, vector<8x784xf32>
      %c0_17 = arith.constant 0 : index
      %c0_18 = arith.constant 0 : index
      %40 = vector.load %arg2[%c0_17, %c0_18] : memref<128x784xf32, #tpu.memory_space<vmem>>, vector<128x784xf32>
      %cst_19 = arith.constant dense<0.000000e+00> : vector<128xf32>
      %41 = vector.multi_reduction <add>, %40, %cst_19 [1] : vector<128x784xf32> to vector<128xf32>
      %42 = vector.shape_cast %41 : vector<128xf32> to vector<128x1xf32>
      %cst_20 = arith.constant 0.00127551018 : f32
      %43 = vector.broadcast %cst_20 : f32 to vector<128x1xf32>
      %44 = arith.mulf %42, %43 : vector<128x1xf32>
      %45 = arith.mulf %40, %40 : vector<128x784xf32>
      %cst_21 = arith.constant dense<0.000000e+00> : vector<128xf32>
      %46 = vector.multi_reduction <add>, %45, %cst_21 [1] : vector<128x784xf32> to vector<128xf32>
      %47 = vector.shape_cast %46 : vector<128xf32> to vector<128x1xf32>
      %48 = arith.mulf %42, %44 : vector<128x1xf32>
      %49 = arith.subf %47, %48 : vector<128x1xf32>
      %cst_22 = arith.constant 9.99999996E-13 : f32
      %50 = vector.broadcast %cst_22 : f32 to vector<128x1xf32>
      %51 = arith.addf %49, %50 : vector<128x1xf32>
      %52 = math.rsqrt %51 : vector<128x1xf32>
      %cst_23 = arith.constant dense<0.000000e+00> : vector<8xf32>
      %53 = vector.multi_reduction <add>, %39, %cst_23 [1] : vector<8x784xf32> to vector<8xf32>
      %54 = vector.shape_cast %53 : vector<8xf32> to vector<8x1xf32>
      %55 = arith.truncf %39 : vector<8x784xf32> to vector<8x784xbf16>
      %56 = arith.truncf %40 : vector<128x784xf32> to vector<128x784xbf16>
      %cst_24 = arith.constant dense<0.000000e+00> : vector<8x128xf32>
      %57 = tpu.matmul %55, %56, %cst_24 {dimension_numbers = #tpu.dot_dimension_numbers<[1], [1], [0], [0], [0, 0, 1, 0], [], []>} : vector<8x784xbf16>, vector<128x784xbf16>, vector<8x128xf32> -> vector<8x128xf32>
      %58 = tpu.transpose %44, [1, 0] : vector<128x1xf32> -> vector<1x128xf32>
      %59 = vector.broadcast %54 : vector<8x1xf32> to vector<8x128xf32>
      %60 = vector.broadcast %58 : vector<1x128xf32> to vector<8x128xf32>
      %61 = arith.mulf %59, %60 : vector<8x128xf32>
      %62 = arith.subf %57, %61 : vector<8x128xf32>
      %63 = tpu.transpose %52, [1, 0] : vector<128x1xf32> -> vector<1x128xf32>
      %64 = vector.broadcast %63 : vector<1x128xf32> to vector<8x128xf32>
      %65 = arith.mulf %62, %64 : vector<8x128xf32>
      %cst_25 = arith.constant 0.000000e+00 : f32
      %66 = vector.broadcast %cst_25 : f32 to vector<8x128xf32>
      %67 = arith.maximumf %65, %66 : vector<8x128xf32>
      %cst_26 = arith.constant 1.41421354 : f32
      %68 = vector.broadcast %cst_26 : f32 to vector<8x128xf32>
      %69 = arith.mulf %67, %68 : vector<8x128xf32>
      %c0_27 = arith.constant 0 : index
      %c0_28 = arith.constant 0 : index
      %70 = vector.load %arg6[%c0_27, %c0_28] : memref<8x128xf32, #tpu.memory_space<vmem>>, vector<8x128xf32>
      tpu.vector_store %arg6[%c0_27, %c0_28], %69 {strides = array<i32>} : memref<8x128xf32, #tpu.memory_space<vmem>>, vector<8x128xf32>,
    } else {
    }
    %c0 = arith.constant 0 : index
    %c0_1 = arith.constant 0 : index
    %c0_2 = arith.constant 0 : index
    %3 = vector.load %arg3[%c0, %c0_1, %c0_2] : memref<1x128x128xf32, #tpu.memory_space<vmem>>, vector<1x128x128xf32>
    %4 = vector.shape_cast %3 : vector<1x128x128xf32> to vector<128x128xf32>
    %c0_3 = arith.constant 0 : index
    %c0_4 = arith.constant 0 : index
    %5 = vector.load %arg6[%c0_3, %c0_4] : memref<8x128xf32, #tpu.memory_space<vmem>>, vector<8x128xf32>
    %cst = arith.constant dense<0.000000e+00> : vector<128xf32>
    %6 = vector.multi_reduction <add>, %4, %cst [1] : vector<128x128xf32> to vector<128xf32>
    %7 = vector.shape_cast %6 : vector<128xf32> to vector<128x1xf32>
    %cst_5 = arith.constant 7.812500e-03 : f32
    %8 = vector.broadcast %cst_5 : f32 to vector<128x1xf32>
    %9 = arith.mulf %7, %8 : vector<128x1xf32>
    %10 = arith.mulf %4, %4 : vector<128x128xf32>
    %cst_6 = arith.constant dense<0.000000e+00> : vector<128xf32>
    %11 = vector.multi_reduction <add>, %10, %cst_6 [1] : vector<128x128xf32> to vector<128xf32>
    %12 = vector.shape_cast %11 : vector<128xf32> to vector<128x1xf32>
    %13 = arith.mulf %7, %9 : vector<128x1xf32>
    %14 = arith.subf %12, %13 : vector<128x1xf32>
    %cst_7 = arith.constant 9.99999996E-13 : f32
    %15 = vector.broadcast %cst_7 : f32 to vector<128x1xf32>
    %16 = arith.addf %14, %15 : vector<128x1xf32>
    %17 = math.rsqrt %16 : vector<128x1xf32>
    %cst_8 = arith.constant dense<0.000000e+00> : vector<8xf32>
    %18 = vector.multi_reduction <add>, %5, %cst_8 [1] : vector<8x128xf32> to vector<8xf32>
    %19 = vector.shape_cast %18 : vector<8xf32> to vector<8x1xf32>
    %20 = arith.truncf %5 : vector<8x128xf32> to vector<8x128xbf16>
    %21 = arith.truncf %4 : vector<128x128xf32> to vector<128x128xbf16>
    %cst_9 = arith.constant dense<0.000000e+00> : vector<8x128xf32>
    %22 = tpu.matmul %20, %21, %cst_9 {dimension_numbers = #tpu.dot_dimension_numbers<[1], [1], [0], [0], [0, 0, 1, 0], [], []>} : vector<8x128xbf16>, vector<128x128xbf16>, vector<8x128xf32> -> vector<8x128xf32>
    %23 = tpu.transpose %9, [1, 0] : vector<128x1xf32> -> vector<1x128xf32>
    %24 = vector.broadcast %19 : vector<8x1xf32> to vector<8x128xf32>
    %25 = vector.broadcast %23 : vector<1x128xf32> to vector<8x128xf32>
    %26 = arith.mulf %24, %25 : vector<8x128xf32>
    %27 = arith.subf %22, %26 : vector<8x128xf32>
    %28 = tpu.transpose %17, [1, 0] : vector<128x1xf32> -> vector<1x128xf32>
    %29 = vector.broadcast %28 : vector<1x128xf32> to vector<8x128xf32>
    %30 = arith.mulf %27, %29 : vector<8x128xf32>
    %cst_10 = arith.constant 0.000000e+00 : f32
    %31 = vector.broadcast %cst_10 : f32 to vector<8x128xf32>
    %32 = arith.maximumf %30, %31 : vector<8x128xf32>
    %cst_11 = arith.constant 1.41421354 : f32
    %33 = vector.broadcast %cst_11 : f32 to vector<8x128xf32>
    %34 = arith.mulf %32, %33 : vector<8x128xf32>
    %c0_12 = arith.constant 0 : index
    %c0_13 = arith.constant 0 : index
    %35 = vector.load %arg6[%c0_12, %c0_13] : memref<8x128xf32, #tpu.memory_space<vmem>>, vector<8x128xf32>
    tpu.vector_store %arg6[%c0_12, %c0_13], %34 {strides = array<i32>} : memref<8x128xf32, #tpu.memory_space<vmem>>, vector<8x128xf32>,
    %c2_i32 = arith.constant 2 : i32
    %36 = arith.cmpi eq, %arg0, %c2_i32 : i32
    %37 = arith.extui %36 : i1 to i32
    %c0_i32_14 = arith.constant 0 : i32
    %38 = arith.cmpi ne, %37, %c0_i32_14 : i32
    scf.if %38 {
      %c0_15 = arith.constant 0 : index
      %c0_16 = arith.constant 0 : index
      %39 = vector.load %arg4[%c0_15, %c0_16] : memref<128x128xf32, #tpu.memory_space<vmem>>, vector<128x128xf32>
      %c0_17 = arith.constant 0 : index
      %c0_18 = arith.constant 0 : index
      %40 = vector.load %arg6[%c0_17, %c0_18] : memref<8x128xf32, #tpu.memory_space<vmem>>, vector<8x128xf32>
      %cst_19 = arith.constant dense<0.000000e+00> : vector<128xf32>
      %41 = vector.multi_reduction <add>, %39, %cst_19 [1] : vector<128x128xf32> to vector<128xf32>
      %42 = vector.shape_cast %41 : vector<128xf32> to vector<128x1xf32>
      %cst_20 = arith.constant 7.812500e-03 : f32
      %43 = vector.broadcast %cst_20 : f32 to vector<128x1xf32>
      %44 = arith.mulf %42, %43 : vector<128x1xf32>
      %45 = arith.mulf %39, %39 : vector<128x128xf32>
      %cst_21 = arith.constant dense<0.000000e+00> : vector<128xf32>
      %46 = vector.multi_reduction <add>, %45, %cst_21 [1] : vector<128x128xf32> to vector<128xf32>
      %47 = vector.shape_cast %46 : vector<128xf32> to vector<128x1xf32>
      %48 = arith.mulf %42, %44 : vector<128x1xf32>
      %49 = arith.subf %47, %48 : vector<128x1xf32>
      %cst_22 = arith.constant 9.99999996E-13 : f32
      %50 = vector.broadcast %cst_22 : f32 to vector<128x1xf32>
      %51 = arith.addf %49, %50 : vector<128x1xf32>
      %52 = math.rsqrt %51 : vector<128x1xf32>
      %cst_23 = arith.constant dense<0.000000e+00> : vector<8xf32>
      %53 = vector.multi_reduction <add>, %40, %cst_23 [1] : vector<8x128xf32> to vector<8xf32>
      %54 = vector.shape_cast %53 : vector<8xf32> to vector<8x1xf32>
      %55 = arith.truncf %40 : vector<8x128xf32> to vector<8x128xbf16>
      %56 = arith.truncf %39 : vector<128x128xf32> to vector<128x128xbf16>
      %cst_24 = arith.constant dense<0.000000e+00> : vector<8x128xf32>
      %57 = tpu.matmul %55, %56, %cst_24 {dimension_numbers = #tpu.dot_dimension_numbers<[1], [1], [0], [0], [0, 0, 1, 0], [], []>} : vector<8x128xbf16>, vector<128x128xbf16>, vector<8x128xf32> -> vector<8x128xf32>
      %58 = tpu.transpose %44, [1, 0] : vector<128x1xf32> -> vector<1x128xf32>
      %59 = vector.broadcast %54 : vector<8x1xf32> to vector<8x128xf32>
      %60 = vector.broadcast %58 : vector<1x128xf32> to vector<8x128xf32>
      %61 = arith.mulf %59, %60 : vector<8x128xf32>
      %62 = arith.subf %57, %61 : vector<8x128xf32>
      %63 = tpu.transpose %52, [1, 0] : vector<128x1xf32> -> vector<1x128xf32>
      %64 = vector.broadcast %63 : vector<1x128xf32> to vector<8x128xf32>
      %65 = arith.mulf %62, %64 : vector<8x128xf32>
      %c0_25 = arith.constant 0 : index
      %c0_26 = arith.constant 0 : index
      %66 = vector.load %arg5[%c0_25, %c0_26] : memref<8x128xf32, #tpu.memory_space<vmem>>, vector<8x128xf32>
      tpu.vector_store %arg5[%c0_25, %c0_26], %65 {strides = array<i32>} : memref<8x128xf32, #tpu.memory_space<vmem>>, vector<8x128xf32>,
    } else {
    }
    return
  }
  func.func @transform_0(%arg0: i32) -> (i32, i32) {
    %c0_i32 = arith.constant 0 : i32
    %c0_i32_0 = arith.constant 0 : i32
    %c0_i32_1 = arith.constant 0 : i32
    return %c0_i32, %c0_i32_0 : i32, i32
  }
  func.func @transform_1(%arg0: i32) -> (i32, i32) {
    %c0_i32 = arith.constant 0 : i32
    %c0_i32_0 = arith.constant 0 : i32
    %c0_i32_1 = arith.constant 0 : i32
    return %c0_i32, %c0_i32_0 : i32, i32
  }
  func.func @transform_2(%arg0: i32) -> (i32, i32, i32) {
    %c0_i32 = arith.constant 0 : i32
    %c0_i32_0 = arith.constant 0 : i32
    %c0_i32_1 = arith.constant 0 : i32
    return %arg0, %c0_i32, %c0_i32_0 : i32, i32, i32
  }
  func.func @transform_3(%arg0: i32) -> (i32, i32) {
    %c0_i32 = arith.constant 0 : i32
    %c0_i32_0 = arith.constant 0 : i32
    %c0_i32_1 = arith.constant 0 : i32
    return %c0_i32, %c0_i32_0 : i32, i32
  }
  func.func @transform_4(%arg0: i32) -> (i32, i32) {
    %c0_i32 = arith.constant 0 : i32
    %c0_i32_0 = arith.constant 0 : i32
    %c0_i32_1 = arith.constant 0 : i32
    return %c0_i32, %c0_i32_0 : i32, i32
  }
}

</mosaic_0001>

<llo_original>
// kernel: cwnnet_forward.1
$region0: #{cwnnet_forward.1}
  #allocation0 [shape = 'u32[]', space=smem, size = 0x4, offset = 0x4, fixed_abs, tag = 'smem constant byte address 0x4 - core index']
  #allocation1 [shape = 'u32[144,128]{1,0:T(1,128)}', space=vmem, size = 0x12000, scoped, tag = 'internal scratch']
  #allocation2 [shape = 'f32[8,128]{1,0:T(8,128)}', space=vmem, size = 0x1000, scoped, tag = 'scratch operand']
  %s0 = inlined_call_operand.vmem [shape: f32[8,784], index: 0, kind: input, shape index: {}]
  %s1 = inlined_call_operand.vmem [shape: f32[128,784], index: 1, kind: input, shape index: {}]
  %s2 = inlined_call_operand.vmem [shape: f32[3,128,128], index: 2, kind: input, shape index: {}]
  %s3 = inlined_call_operand.vmem [shape: f32[128,128], index: 3, kind: input, shape index: {}]
  %s4 = inlined_call_operand.hbm [shape: f32[8,128], index: 4, kind: output, shape index: {}]
  %s5 = sld [smem:[#allocation0]]
  $region57: #{cwnnet_forward.1} parent=0
    _
  %s7 = ssub.s32 1, %s5
  %s8 = scalar_select 0, %s7, %s5
  $region1: #{cwnnet_forward.1} parent=0
    #allocation3 [shape = 'u8[4096]{0}', space=vmem, size = 0x1000, scoped, tag = 'output window, operand 0, single buffered']
    #allocation4 [shape = 's32[2]{0}', space=sflag, size = 0x8, scoped, tag = 'scoped memory for cwnnet_forward.1']
    %9 = vsyncpa [#allocation4], 0
    loop: start=0, step=1, limit=5
    $region2: #{cwnnet_forward.1} parent=1 // loop_pre_header
      _
    $region3: #{cwnnet_forward.1} parent=1 // loop_header
      %s11 = sphi 0, %s15
      %p12 = scmp.ge.s32.totalorder %s11, 5
      %s19 = sphi 0, %s19
      %s21 = sphi 0, %s19
      %s22 = sphi 0, %s21
      %s36 = sphi 0, %s22
      %s40 = sphi 0, %s40
      %s42 = sphi 0, %s40
      %s43 = sphi 0, %s42
      %s57 = sphi 0, %s43
      %s63 = sphi 0, %s65
      %s66 = sphi 0, %s63
      %s67 = sphi 0, %s66
      %s83 = sphi 0, %s67
      %s87 = sphi 0, %s87
      %s89 = sphi 0, %s87
      %s90 = sphi 0, %s89
      %s104 = sphi 0, %s90
      %s108 = sphi 0, %s108
      %s110 = sphi 0, %s108
      %s111 = sphi 0, %s110
      %s125 = sphi 0, %s111
    $region4: #{cwnnet_forward.1} parent=1 // loop_header_branch
      %14 = sbr.rel (%p12) target = $region8
    $region5: #{cwnnet_forward.1} parent=1 // loop_body
      %s16 = ssub.s32 %s11, 1
      %s17 = ssub.s32 %s11, 2
      %s18 = sadd.s32 %s11, 1
      %s20 = sadd.s32 %s19, 1
      %p23 = scmp.eq.s32.totalorder %s11, 2
      %p24 = scmp.ne.s32.totalorder %s19, %s21
      %p25 = scmp.eq.s32.totalorder %s11, 0
      %p26 = por %p24, %p25
      %p27 = scmp.ne.s32.totalorder %s19, %s21
      %p28 = scmp.eq.s32.totalorder %s16, 2
      %p29 = por %p27, %p28
      %p30 = scmp.ne.s32.totalorder %s21, %s22
      %p31 = scmp.eq.s32.totalorder %s16, 0
      %p32 = por %p30, %p31
      %p33 = scmp.ne.s32.totalorder %s21, %s22
      %p34 = scmp.eq.s32.totalorder %s17, 2
      %p35 = por %p33, %p34
      %p37 = scmp.ne.s32.totalorder %s22, %s36
      %p38 = scmp.eq.s32.totalorder %s17, 0
      %p39 = por %p37, %p38
      %s41 = sadd.s32 %s40, 1
      %p44 = scmp.eq.s32.totalorder %s11, 2
      %p45 = scmp.ne.s32.totalorder %s40, %s42
      %p46 = scmp.eq.s32.totalorder %s11, 0
      %p47 = por %p45, %p46
      %p48 = scmp.ne.s32.totalorder %s40, %s42
      %p49 = scmp.eq.s32.totalorder %s16, 2
      %p50 = por %p48, %p49
      %p51 = scmp.ne.s32.totalorder %s42, %s43
      %p52 = scmp.eq.s32.totalorder %s16, 0
      %p53 = por %p51, %p52
      %p54 = scmp.ne.s32.totalorder %s42, %s43
      %p55 = scmp.eq.s32.totalorder %s17, 2
      %p56 = por %p54, %p55
      %p58 = scmp.ne.s32.totalorder %s43, %s57
      %p59 = scmp.eq.s32.totalorder %s17, 0
      %p60 = por %p58, %p59
      %s61 = ssub.s32 %s11, %s18
      %p62 = scmp.eq.s32.totalorder %s61, 0
      %s64 = sadd.s32 %s63, 1
      %s65 = scalar_select %p62, %s63, %s64
      %p68 = pneg %p62
      %p69 = scmp.eq.s32.totalorder %s11, 2
      %p70 = por %p68, %p69
      %p71 = scmp.ne.s32.totalorder %s63, %s66
      %p72 = scmp.eq.s32.totalorder %s11, 0
      %p73 = por %p71, %p72
      %p74 = scmp.ne.s32.totalorder %s63, %s66
      %p75 = scmp.eq.s32.totalorder %s16, 2
      %p76 = por %p74, %p75
      %p77 = scmp.ne.s32.totalorder %s66, %s67
      %p78 = scmp.eq.s32.totalorder %s16, 0
      %p79 = por %p77, %p78
      %p80 = scmp.ne.s32.totalorder %s66, %s67
      %p81 = scmp.eq.s32.totalorder %s17, 2
      %p82 = por %p80, %p81
      %p84 = scmp.ne.s32.totalorder %s67, %s83
      %p85 = scmp.eq.s32.totalorder %s17, 0
      %p86 = por %p84, %p85
      %s88 = sadd.s32 %s87, 1
      %p91 = scmp.eq.s32.totalorder %s11, 2
      %p92 = scmp.ne.s32.totalorder %s87, %s89
      %p93 = scmp.eq.s32.totalorder %s11, 0
      %p94 = por %p92, %p93
      %p95 = scmp.ne.s32.totalorder %s87, %s89
      %p96 = scmp.eq.s32.totalorder %s16, 2
      %p97 = por %p95, %p96
      %p98 = scmp.ne.s32.totalorder %s89, %s90
      %p99 = scmp.eq.s32.totalorder %s16, 0
      %p100 = por %p98, %p99
      %p101 = scmp.ne.s32.totalorder %s89, %s90
      %p102 = scmp.eq.s32.totalorder %s17, 2
      %p103 = por %p101, %p102
      %p105 = scmp.ne.s32.totalorder %s90, %s104
      %p106 = scmp.eq.s32.totalorder %s17, 0
      %p107 = por %p105, %p106
      %s109 = sadd.s32 %s108, 1
      %p112 = scmp.eq.s32.totalorder %s11, 2
      %p113 = scmp.ne.s32.totalorder %s108, %s110
      %p114 = scmp.eq.s32.totalorder %s11, 0
      %p115 = por %p113, %p114
      %p116 = scmp.ne.s32.totalorder %s108, %s110
      %p117 = scmp.eq.s32.totalorder %s16, 2
      %p118 = por %p116, %p117
      %p119 = scmp.ne.s32.totalorder %s110, %s111
      %p120 = scmp.eq.s32.totalorder %s16, 0
      %p121 = por %p119, %p120
      %p122 = scmp.ne.s32.totalorder %s110, %s111
      %p123 = scmp.eq.s32.totalorder %s17, 2
      %p124 = por %p122, %p123
      %p126 = scmp.ne.s32.totalorder %s111, %s125
      %p127 = scmp.eq.s32.totalorder %s17, 0
      %p128 = por %p126, %p127
      %p129 = scmp.le.s32.totalorder 1, %s11
      %p130 = scmp.lt.s32.totalorder %s11, 4
      %p131 = pnand %p129, %p130
      %p132 = pneg %p131
      // Predicated region
      $region9: #{cwnnet_forward.1} parent=5 // pred_check
        _
      $region10: #{cwnnet_forward.1} parent=5 // pred_check_branch
        %134 = sbr.rel (%p131) target = $region12
      $region11: #{cwnnet_forward.1} parent=5 // pred_region
        %s135 = ssub.s32 %s11, 1
        // Predicated region
        $region13: #{cwnnet_forward.1} parent=11 // pred_check
          %p136 = pneg %p32
        $region14: #{cwnnet_forward.1} parent=11 // pred_check_branch
          %138 = sbr.rel (%p136) target = $region16
        $region15: #{cwnnet_forward.1} parent=11 // pred_region
          _
        $region16: #{cwnnet_forward.1} parent=11 // pred_fallthru
          _
        // Predicated region
        $region17: #{cwnnet_forward.1} parent=11 // pred_check
          %p139 = pneg %p53
        $region18: #{cwnnet_forward.1} parent=11 // pred_check_branch
          %141 = sbr.rel (%p139) target = $region20
        $region19: #{cwnnet_forward.1} parent=11 // pred_region
          _
        $region20: #{cwnnet_forward.1} parent=11 // pred_fallthru
          _
        // Predicated region
        $region21: #{cwnnet_forward.1} parent=11 // pred_check
          %p142 = pneg %p100
        $region22: #{cwnnet_forward.1} parent=11 // pred_check_branch
          %144 = sbr.rel (%p142) target = $region24
        $region23: #{cwnnet_forward.1} parent=11 // pred_region
          _
        $region24: #{cwnnet_forward.1} parent=11 // pred_fallthru
          _
      $region12: #{cwnnet_forward.1} parent=5 // pred_fallthru
        _
      %p145 = scmp.lt.s32.totalorder %s11, 3
      // Predicated region
      $region25: #{cwnnet_forward.1} parent=5 // pred_check
        %p146 = pneg %p145
      $region26: #{cwnnet_forward.1} parent=5 // pred_check_branch
        %148 = sbr.rel (%p146) target = $region28
      $region27: #{cwnnet_forward.1} parent=5 // pred_region
        // Predicated region
        $region29: #{cwnnet_forward.1} parent=27 // pred_check
          %p149 = pneg %p73
        $region30: #{cwnnet_forward.1} parent=27 // pred_check_branch
          %151 = sbr.rel (%p149) target = $region32
        $region31: #{cwnnet_forward.1} parent=27 // pred_region
          %p152 = scmp.lt.s32.totalorder %s11, 2
          %s153 = scalar_select %p152, %s11, 2
          %s154 = smul.addr %s153, 16
          %s155 = smul.addr %s154, 8
          %s156 = scalar_lea.vmem %s2, %s155
        $region32: #{cwnnet_forward.1} parent=27 // pred_fallthru
          _
      $region28: #{cwnnet_forward.1} parent=5 // pred_fallthru
        _
      %p157 = scmp.le.s32.totalorder 1, %s11
      %p158 = scmp.lt.s32.totalorder %s11, 4
      %p159 = pnand %p157, %p158
      %p160 = pneg %p159
      // Predicated region
      $region33: #{cwnnet_forward.1} parent=5 // pred_check
        _
      $region34: #{cwnnet_forward.1} parent=5 // pred_check_branch
        %162 = sbr.rel (%p159) target = $region36
      $region35: #{cwnnet_forward.1} parent=5 // pred_region
        %s163 = ssub.s32 %s11, 1
        %p164 = pneg %p32
        %p165 = pneg %p29
        %p166 = pneg %p53
        %p167 = pneg %p50
        %p168 = scmp.lt.s32.totalorder %s16, 2
        %s169 = scalar_select %p168, %s16, 2
        %s170 = smul.addr %s169, 16
        %s171 = smul.addr %s170, 8
        %s172 = scalar_lea.vmem %s2, %s171
        %p173 = pneg %p79
        %p174 = pneg %p76
        %p175 = pneg %p100
        %p176 = pneg %p97
        %p177 = pneg %p121
        %p178 = pneg %p118
        %p179 = scmp.lt.s32.totalorder %s16, 2
        %s180 = scalar_select %p179, %s16, 2
        %s181 = smul.addr %s180, 16
        %s182 = smul.addr %s181, 8
        %s183 = scalar_lea.vmem %s2, %s182
        %p185 = scmp.eq.s32.totalorder %s16, 0
        // Predicated region
        $region37: #{cwnnet_forward.1} parent=35 // pred_check
          %p186 = pneg %p185
        $region38: #{cwnnet_forward.1} parent=35 // pred_check_branch
          %188 = sbr.rel (%p186) target = $region40
        $region39: #{cwnnet_forward.1} parent=35 // pred_region
          %v189 = vld [vmem:[%s0] sm:$0xff]
          %v190 = vld [vmem:[%s0 + $0x8] sm:$0xff]
          %v191 = vld [vmem:[%s0 + $0x10] sm:$0xff]
          %v192 = vld [vmem:[%s0 + $0x18] sm:$0xff]
          %v193 = vld [vmem:[%s0 + $0x20] sm:$0xff]
          %v194 = vld [vmem:[%s0 + $0x28] sm:$0xff]
          %v195 = vld [vmem:[%s0 + $0x30] sm:$0xff]
          %v196 = vld [vmem:[%s1] sm:$0xff]
          %v197 = vld [vmem:[%s1 + $0x8] sm:$0xff]
          %v198 = vld [vmem:[%s1 + $0x10] sm:$0xff]
          %v199 = vld [vmem:[%s1 + $0x18] sm:$0xff]
          %v200 = vld [vmem:[%s1 + $0x20] sm:$0xff]
          %v201 = vld [vmem:[%s1 + $0x28] sm:$0xff]
          %v202 = vld [vmem:[%s1 + $0x30] sm:$0xff]
          %v203 = vld [vmem:[%s1 + $0x38] sm:$0xff]
          %v204 = vld [vmem:[%s1 + $0x40] sm:$0xff]
          %v205 = vld [vmem:[%s1 + $0x48] sm:$0xff]
          %v206 = vld [vmem:[%s1 + $0x50] sm:$0xff]
          %v207 = vld [vmem:[%s1 + $0x58] sm:$0xff]
          %v208 = vld [vmem:[%s1 + $0x60] sm:$0xff]
          %v209 = vld [vmem:[%s1 + $0x68] sm:$0xff]
          %v210 = vld [vmem:[%s1 + $0x70] sm:$0xff]
          %v211 = vld [vmem:[%s1 + $0x78] sm:$0xff]
          %v212 = vld [vmem:[%s1 + $0x80] sm:$0xff]
          %v213 = vld [vmem:[%s1 + $0x88] sm:$0xff]
          %v214 = vld [vmem:[%s1 + $0x90] sm:$0xff]
          %v215 = vld [vmem:[%s1 + $0x98] sm:$0xff]
          %v216 = vld [vmem:[%s1 + $0xa0] sm:$0xff]
          %v217 = vld [vmem:[%s1 + $0xa8] sm:$0xff]
          %v218 = vld [vmem:[%s1 + $0xb0] sm:$0xff]
          %v219 = vld [vmem:[%s1 + $0xb8] sm:$0xff]
          %v220 = vld [vmem:[%s1 + $0xc0] sm:$0xff]
          %v221 = vld [vmem:[%s1 + $0xc8] sm:$0xff]
          %v222 = vld [vmem:[%s1 + $0xd0] sm:$0xff]
          %v223 = vld [vmem:[%s1 + $0xd8] sm:$0xff]
          %v224 = vld [vmem:[%s1 + $0xe0] sm:$0xff]
          %v225 = vld [vmem:[%s1 + $0xe8] sm:$0xff]
          %v226 = vld [vmem:[%s1 + $0xf0] sm:$0xff]
          %v227 = vld [vmem:[%s1 + $0xf8] sm:$0xff]
          %v228 = vld [vmem:[%s1 + $0x100] sm:$0xff]
          %v229 = vld [vmem:[%s1 + $0x108] sm:$0xff]
          %v230 = vld [vmem:[%s1 + $0x110] sm:$0xff]
          %v231 = vld [vmem:[%s1 + $0x118] sm:$0xff]
          %v232 = vld [vmem:[%s1 + $0x120] sm:$0xff]
          %v233 = vld [vmem:[%s1 + $0x128] sm:$0xff]
          %v234 = vld [vmem:[%s1 + $0x130] sm:$0xff]
          %v235 = vld [vmem:[%s1 + $0x138] sm:$0xff]
          %v236 = vld [vmem:[%s1 + $0x140] sm:$0xff]
          %v237 = vld [vmem:[%s1 + $0x148] sm:$0xff]
          %v238 = vld [vmem:[%s1 + $0x150] sm:$0xff]
          %v239 = vld [vmem:[%s1 + $0x158] sm:$0xff]
          %v240 = vld [vmem:[%s1 + $0x160] sm:$0xff]
          %v241 = vld [vmem:[%s1 + $0x168] sm:$0xff]
          %v242 = vld [vmem:[%s1 + $0x170] sm:$0xff]
          %v243 = vld [vmem:[%s1 + $0x178] sm:$0xff]
          %v244 = vld [vmem:[%s1 + $0x180] sm:$0xff]
          %v245 = vld [vmem:[%s1 + $0x188] sm:$0xff]
          %v246 = vld [vmem:[%s1 + $0x190] sm:$0xff]
          %v247 = vld [vmem:[%s1 + $0x198] sm:$0xff]
          %v248 = vld [vmem:[%s1 + $0x1a0] sm:$0xff]
          %v249 = vld [vmem:[%s1 + $0x1a8] sm:$0xff]
          %v250 = vld [vmem:[%s1 + $0x1b0] sm:$0xff]
          %v251 = vld [vmem:[%s1 + $0x1b8] sm:$0xff]
          %v252 = vld [vmem:[%s1 + $0x1c0] sm:$0xff]
          %v253 = vld [vmem:[%s1 + $0x1c8] sm:$0xff]
          %v254 = vld [vmem:[%s1 + $0x1d0] sm:$0xff]
          %v255 = vld [vmem:[%s1 + $0x1d8] sm:$0xff]
          %v256 = vld [vmem:[%s1 + $0x1e0] sm:$0xff]
          %v257 = vld [vmem:[%s1 + $0x1e8] sm:$0xff]
          %v258 = vld [vmem:[%s1 + $0x1f0] sm:$0xff]
          %v259 = vld [vmem:[%s1 + $0x1f8] sm:$0xff]
          %v260 = vld [vmem:[%s1 + $0x200] sm:$0xff]
          %v261 = vld [vmem:[%s1 + $0x208] sm:$0xff]
          %v262 = vld [vmem:[%s1 + $0x210] sm:$0xff]
          %v263 = vld [vmem:[%s1 + $0x218] sm:$0xff]
          %v264 = vld [vmem:[%s1 + $0x220] sm:$0xff]
          %v265 = vld [vmem:[%s1 + $0x228] sm:$0xff]
          %v266 = vld [vmem:[%s1 + $0x230] sm:$0xff]
          %v267 = vld [vmem:[%s1 + $0x238] sm:$0xff]
          %v268 = vld [vmem:[%s1 + $0x240] sm:$0xff]
          %v269 = vld [vmem:[%s1 + $0x248] sm:$0xff]
          %v270 = vld [vmem:[%s1 + $0x250] sm:$0xff]
          %v271 = vld [vmem:[%s1 + $0x258] sm:$0xff]
          %v272 = vld [vmem:[%s1 + $0x260] sm:$0xff]
          %v273 = vld [vmem:[%s1 + $0x268] sm:$0xff]
          %v274 = vld [vmem:[%s1 + $0x270] sm:$0xff]
          %v275 = vld [vmem:[%s1 + $0x278] sm:$0xff]
          %v276 = vld [vmem:[%s1 + $0x280] sm:$0xff]
          %v277 = vld [vmem:[%s1 + $0x288] sm:$0xff]
          %v278 = vld [vmem:[%s1 + $0x290] sm:$0xff]
          %v279 = vld [vmem:[%s1 + $0x298] sm:$0xff]
          %v280 = vld [vmem:[%s1 + $0x2a0] sm:$0xff]
          %v281 = vld [vmem:[%s1 + $0x2a8] sm:$0xff]
          %v282 = vld [vmem:[%s1 + $0x2b0] sm:$0xff]
          %v283 = vld [vmem:[%s1 + $0x2b8] sm:$0xff]
          %v284 = vld [vmem:[%s1 + $0x2c0] sm:$0xff]
          %v285 = vld [vmem:[%s1 + $0x2c8] sm:$0xff]
          %v286 = vld [vmem:[%s1 + $0x2d0] sm:$0xff]
          %v287 = vld [vmem:[%s1 + $0x2d8] sm:$0xff]
          %v288 = vld [vmem:[%s1 + $0x2e0] sm:$0xff]
          %v289 = vld [vmem:[%s1 + $0x2e8] sm:$0xff]
          %v290 = vld [vmem:[%s1 + $0x2f0] sm:$0xff]
          %v291 = vld [vmem:[%s1 + $0x2f8] sm:$0xff]
          %v292 = vld [vmem:[%s1 + $0x300] sm:$0xff]
          %v293 = vld [vmem:[%s1 + $0x308] sm:$0xff]
          %v294 = vld [vmem:[%s1 + $0x310] sm:$0xff]
          %v295 = vld [vmem:[%s1 + $0x318] sm:$0xff]
          %v296 = vld [vmem:[%s1 + $0x320] sm:$0xff]
          %v297 = vld [vmem:[%s1 + $0x328] sm:$0xff]
          %v298 = vld [vmem:[%s1 + $0x330] sm:$0xff]
          %v299 = vld [vmem:[%s1 + $0x338] sm:$0xff]
          %v300 = vld [vmem:[%s1 + $0x340] sm:$0xff]
          %v301 = vld [vmem:[%s1 + $0x348] sm:$0xff]
          %v302 = vld [vmem:[%s1 + $0x350] sm:$0xff]
          %v303 = vld [vmem:[%s1 + $0x358] sm:$0xff]
          %v304 = vld [vmem:[%s1 + $0x360] sm:$0xff]
          %v305 = vld [vmem:[%s1 + $0x368] sm:$0xff]
          %v306 = vld [vmem:[%s1 + $0x370] sm:$0xff]
          %v307 = vld [vmem:[%s1 + $0x378] sm:$0xff]
          %v308 = vadd.f32 %v196, %v197
          %v309 = vadd.f32 %v308, %v198
          %v310 = vadd.f32 %v309, %v199
          %v311 = vadd.f32 %v310, %v200
          %v312 = vadd.f32 %v311, %v201
          %vm313 = vcmask 130048
          %v314 = vsel %vm313, %v202, 0.0
          %v315 = vadd.f32 %v312, %v314
          %316 = vadd.xlane.f32.xlu0 %v315
          %v317 = vpop.xlane.xlu0 %316
          %v318 = vadd.f32 %v203, %v204
          %v319 = vadd.f32 %v318, %v205
          %v320 = vadd.f32 %v319, %v206
          %v321 = vadd.f32 %v320, %v207
          %v322 = vadd.f32 %v321, %v208
          %v323 = vsel %vm313, %v209, 0.0
          %v324 = vadd.f32 %v322, %v323
          %325 = vadd.xlane.f32.xlu0 %v324
          %v326 = vpop.xlane.xlu0 %325
          %v327 = vadd.f32 %v210, %v211
          %v328 = vadd.f32 %v327, %v212
          %v329 = vadd.f32 %v328, %v213
          %v330 = vadd.f32 %v329, %v214
          %v331 = vadd.f32 %v330, %v215
          %v332 = vsel %vm313, %v216, 0.0
          %v333 = vadd.f32 %v331, %v332
          %334 = vadd.xlane.f32.xlu0 %v333
          %v335 = vpop.xlane.xlu0 %334
          %v336 = vadd.f32 %v217, %v218
          %v337 = vadd.f32 %v336, %v219
          %v338 = vadd.f32 %v337, %v220
          %v339 = vadd.f32 %v338, %v221
          %v340 = vadd.f32 %v339, %v222
          %v341 = vsel %vm313, %v223, 0.0
          %v342 = vadd.f32 %v340, %v341
          %343 = vadd.xlane.f32.xlu0 %v342
          %v344 = vpop.xlane.xlu0 %343
          %v345 = vadd.f32 %v224, %v225
          %v346 = vadd.f32 %v345, %v226
          %v347 = vadd.f32 %v346, %v227
          %v348 = vadd.f32 %v347, %v228
          %v349 = vadd.f32 %v348, %v229
          %v350 = vsel %vm313, %v230, 0.0
          %v351 = vadd.f32 %v349, %v350
          %352 = vadd.xlane.f32.xlu0 %v351
          %v353 = vpop.xlane.xlu0 %352
          %v354 = vadd.f32 %v231, %v232
          %v355 = vadd.f32 %v354, %v233
          %v356 = vadd.f32 %v355, %v234
          %v357 = vadd.f32 %v356, %v235
          %v358 = vadd.f32 %v357, %v236
          %v359 = vsel %vm313, %v237, 0.0
          %v360 = vadd.f32 %v358, %v359
          %361 = vadd.xlane.f32.xlu0 %v360
          %v362 = vpop.xlane.xlu0 %361
          %v363 = vadd.f32 %v238, %v239
          %v364 = vadd.f32 %v363, %v240
          %v365 = vadd.f32 %v364, %v241
          %v366 = vadd.f32 %v365, %v242
          %v367 = vadd.f32 %v366, %v243
          %v368 = vsel %vm313, %v244, 0.0
          %v369 = vadd.f32 %v367, %v368
          %370 = vadd.xlane.f32.xlu0 %v369
          %v371 = vpop.xlane.xlu0 %370
          %v372 = vadd.f32 %v245, %v246
          %v373 = vadd.f32 %v372, %v247
          %v374 = vadd.f32 %v373, %v248
          %v375 = vadd.f32 %v374, %v249
          %v376 = vadd.f32 %v375, %v250
          %v377 = vsel %vm313, %v251, 0.0
          %v378 = vadd.f32 %v376, %v377
          %379 = vadd.xlane.f32.xlu0 %v378
          %v380 = vpop.xlane.xlu0 %379
          %v381 = vadd.f32 %v252, %v253
          %v382 = vadd.f32 %v381, %v254
          %v383 = vadd.f32 %v382, %v255
          %v384 = vadd.f32 %v383, %v256
          %v385 = vadd.f32 %v384, %v257
          %v386 = vsel %vm313, %v258, 0.0
          %v387 = vadd.f32 %v385, %v386
          %388 = vadd.xlane.f32.xlu0 %v387
          %v389 = vpop.xlane.xlu0 %388
          %v390 = vadd.f32 %v259, %v260
          %v391 = vadd.f32 %v390, %v261
          %v392 = vadd.f32 %v391, %v262
          %v393 = vadd.f32 %v392, %v263
          %v394 = vadd.f32 %v393, %v264
          %v395 = vsel %vm313, %v265, 0.0
          %v396 = vadd.f32 %v394, %v395
          %397 = vadd.xlane.f32.xlu0 %v396
          %v398 = vpop.xlane.xlu0 %397
          %v399 = vadd.f32 %v266, %v267
          %v400 = vadd.f32 %v399, %v268
          %v401 = vadd.f32 %v400, %v269
          %v402 = vadd.f32 %v401, %v270
          %v403 = vadd.f32 %v402, %v271
          %v404 = vsel %vm313, %v272, 0.0
          %v405 = vadd.f32 %v403, %v404
          %406 = vadd.xlane.f32.xlu0 %v405
          %v407 = vpop.xlane.xlu0 %406
          %v408 = vadd.f32 %v273, %v274
          %v409 = vadd.f32 %v408, %v275
          %v410 = vadd.f32 %v409, %v276
          %v411 = vadd.f32 %v410, %v277
          %v412 = vadd.f32 %v411, %v278
          %v413 = vsel %vm313, %v279, 0.0
          %v414 = vadd.f32 %v412, %v413
          %415 = vadd.xlane.f32.xlu0 %v414
          %v416 = vpop.xlane.xlu0 %415
          %v417 = vadd.f32 %v280, %v281
          %v418 = vadd.f32 %v417, %v282
          %v419 = vadd.f32 %v418, %v283
          %v420 = vadd.f32 %v419, %v284
          %v421 = vadd.f32 %v420, %v285
          %v422 = vsel %vm313, %v286, 0.0
          %v423 = vadd.f32 %v421, %v422
          %424 = vadd.xlane.f32.xlu0 %v423
          %v425 = vpop.xlane.xlu0 %424
          %v426 = vadd.f32 %v287, %v288
          %v427 = vadd.f32 %v426, %v289
          %v428 = vadd.f32 %v427, %v290
          %v429 = vadd.f32 %v428, %v291
          %v430 = vadd.f32 %v429, %v292
          %v431 = vsel %vm313, %v293, 0.0
          %v432 = vadd.f32 %v430, %v431
          %433 = vadd.xlane.f32.xlu0 %v432
          %v434 = vpop.xlane.xlu0 %433
          %v435 = vadd.f32 %v294, %v295
          %v436 = vadd.f32 %v435, %v296
          %v437 = vadd.f32 %v436, %v297
          %v438 = vadd.f32 %v437, %v298
          %v439 = vadd.f32 %v438, %v299
          %v440 = vsel %vm313, %v300, 0.0
          %v441 = vadd.f32 %v439, %v440
          %442 = vadd.xlane.f32.xlu0 %v441
          %v443 = vpop.xlane.xlu0 %442
          %v444 = vadd.f32 %v301, %v302
          %v445 = vadd.f32 %v444, %v303
          %v446 = vadd.f32 %v445, %v304
          %v447 = vadd.f32 %v446, %v305
          %v448 = vadd.f32 %v447, %v306
          %v449 = vsel %vm313, %v307, 0.0
          %v450 = vadd.f32 %v448, %v449
          %451 = vadd.xlane.f32.xlu0 %v450
          %v452 = vpop.xlane.xlu0 %451
          %v453 = vmul.f32 %v317, 0.0012755102
          %v454 = vmul.f32 %v326, 0.0012755102
          %v455 = vmul.f32 %v335, 0.0012755102
          %v456 = vmul.f32 %v344, 0.0012755102
          %v457 = vmul.f32 %v353, 0.0012755102
          %v458 = vmul.f32 %v362, 0.0012755102
          %v459 = vmul.f32 %v371, 0.0012755102
          %v460 = vmul.f32 %v380, 0.0012755102
          %v461 = vmul.f32 %v389, 0.0012755102
          %v462 = vmul.f32 %v398, 0.0012755102
          %v463 = vmul.f32 %v407, 0.0012755102
          %v464 = vmul.f32 %v416, 0.0012755102
          %v465 = vmul.f32 %v425, 0.0012755102
          %v466 = vmul.f32 %v434, 0.0012755102
          %v467 = vmul.f32 %v443, 0.0012755102
          %v468 = vmul.f32 %v452, 0.0012755102
          %v469 = vmul.f32 %v196, %v196
          %v470 = vmul.f32 %v197, %v197
          %v471 = vmul.f32 %v198, %v198
          %v472 = vmul.f32 %v199, %v199
          %v473 = vmul.f32 %v200, %v200
          %v474 = vmul.f32 %v201, %v201
          %v475 = vmul.f32 %v202, %v202
          %v476 = vmul.f32 %v203, %v203
          %v477 = vmul.f32 %v204, %v204
          %v478 = vmul.f32 %v205, %v205
          %v479 = vmul.f32 %v206, %v206
          %v480 = vmul.f32 %v207, %v207
          %v481 = vmul.f32 %v208, %v208
          %v482 = vmul.f32 %v209, %v209
          %v483 = vmul.f32 %v210, %v210
          %v484 = vmul.f32 %v211, %v211
          %v485 = vmul.f32 %v212, %v212
          %v486 = vmul.f32 %v213, %v213
          %v487 = vmul.f32 %v214, %v214
          %v488 = vmul.f32 %v215, %v215
          %v489 = vmul.f32 %v216, %v216
          %v490 = vmul.f32 %v217, %v217
          %v491 = vmul.f32 %v218, %v218
          %v492 = vmul.f32 %v219, %v219
          %v493 = vmul.f32 %v220, %v220
          %v494 = vmul.f32 %v221, %v221
          %v495 = vmul.f32 %v222, %v222
          %v496 = vmul.f32 %v223, %v223
          %v497 = vmul.f32 %v224, %v224
          %v498 = vmul.f32 %v225, %v225
          %v499 = vmul.f32 %v226, %v226
          %v500 = vmul.f32 %v227, %v227
          %v501 = vmul.f32 %v228, %v228
          %v502 = vmul.f32 %v229, %v229
          %v503 = vmul.f32 %v230, %v230
          %v504 = vmul.f32 %v231, %v231
          %v505 = vmul.f32 %v232, %v232
          %v506 = vmul.f32 %v233, %v233
          %v507 = vmul.f32 %v234, %v234
          %v508 = vmul.f32 %v235, %v235
          %v509 = vmul.f32 %v236, %v236
          %v510 = vmul.f32 %v237, %v237
          %v511 = vmul.f32 %v238, %v238
          %v512 = vmul.f32 %v239, %v239
          %v513 = vmul.f32 %v240, %v240
          %v514 = vmul.f32 %v241, %v241
          %v515 = vmul.f32 %v242, %v242
          %v516 = vmul.f32 %v243, %v243
          %v517 = vmul.f32 %v244, %v244
          %v518 = vmul.f32 %v245, %v245
          %v519 = vmul.f32 %v246, %v246
          %v520 = vmul.f32 %v247, %v247
          %v521 = vmul.f32 %v248, %v248
          %v522 = vmul.f32 %v249, %v249
          %v523 = vmul.f32 %v250, %v250
          %v524 = vmul.f32 %v251, %v251
          %v525 = vmul.f32 %v252, %v252
          %v526 = vmul.f32 %v253, %v253
          %v527 = vmul.f32 %v254, %v254
          %v528 = vmul.f32 %v255, %v255
          %v529 = vmul.f32 %v256, %v256
          %v530 = vmul.f32 %v257, %v257
          %v531 = vmul.f32 %v258, %v258
          %v532 = vmul.f32 %v259, %v259
          %v533 = vmul.f32 %v260, %v260
          %v534 = vmul.f32 %v261, %v261
          %v535 = vmul.f32 %v262, %v262
          %v536 = vmul.f32 %v263, %v263
          %v537 = vmul.f32 %v264, %v264
          %v538 = vmul.f32 %v265, %v265
          %v539 = vmul.f32 %v266, %v266
          %v540 = vmul.f32 %v267, %v267
          %v541 = vmul.f32 %v268, %v268
          %v542 = vmul.f32 %v269, %v269
          %v543 = vmul.f32 %v270, %v270
          %v544 = vmul.f32 %v271, %v271
          %v545 = vmul.f32 %v272, %v272
          %v546 = vmul.f32 %v273, %v273
          %v547 = vmul.f32 %v274, %v274
          %v548 = vmul.f32 %v275, %v275
          %v549 = vmul.f32 %v276, %v276
          %v550 = vmul.f32 %v277, %v277
          %v551 = vmul.f32 %v278, %v278
          %v552 = vmul.f32 %v279, %v279
          %v553 = vmul.f32 %v280, %v280
          %v554 = vmul.f32 %v281, %v281
          %v555 = vmul.f32 %v282, %v282
          %v556 = vmul.f32 %v283, %v283
          %v557 = vmul.f32 %v284, %v284
          %v558 = vmul.f32 %v285, %v285
          %v559 = vmul.f32 %v286, %v286
          %v560 = vmul.f32 %v287, %v287
          %v561 = vmul.f32 %v288, %v288
          %v562 = vmul.f32 %v289, %v289
          %v563 = vmul.f32 %v290, %v290
          %v564 = vmul.f32 %v291, %v291
          %v565 = vmul.f32 %v292, %v292
          %v566 = vmul.f32 %v293, %v293
          %v567 = vmul.f32 %v294, %v294
          %v568 = vmul.f32 %v295, %v295
          %v569 = vmul.f32 %v296, %v296
          %v570 = vmul.f32 %v297, %v297
          %v571 = vmul.f32 %v298, %v298
          %v572 = vmul.f32 %v299, %v299
          %v573 = vmul.f32 %v300, %v300
          %v574 = vmul.f32 %v301, %v301
          %v575 = vmul.f32 %v302, %v302
          %v576 = vmul.f32 %v303, %v303
          %v577 = vmul.f32 %v304, %v304
          %v578 = vmul.f32 %v305, %v305
          %v579 = vmul.f32 %v306, %v306
          %v580 = vmul.f32 %v307, %v307
          %v581 = vadd.f32 %v469, %v470
          %v582 = vadd.f32 %v581, %v471
          %v583 = vadd.f32 %v582, %v472
          %v584 = vadd.f32 %v583, %v473
          %v585 = vadd.f32 %v584, %v474
          %v586 = vsel %vm313, %v475, 0.0
          %v587 = vadd.f32 %v585, %v586
          %588 = vadd.xlane.f32.xlu0 %v587
          %v589 = vpop.xlane.xlu0 %588
          %v590 = vadd.f32 %v476, %v477
          %v591 = vadd.f32 %v590, %v478
          %v592 = vadd.f32 %v591, %v479
          %v593 = vadd.f32 %v592, %v480
          %v594 = vadd.f32 %v593, %v481
          %v595 = vsel %vm313, %v482, 0.0
          %v596 = vadd.f32 %v594, %v595
          %597 = vadd.xlane.f32.xlu0 %v596
          %v598 = vpop.xlane.xlu0 %597
          %v599 = vadd.f32 %v483, %v484
          %v600 = vadd.f32 %v599, %v485
          %v601 = vadd.f32 %v600, %v486
          %v602 = vadd.f32 %v601, %v487
          %v603 = vadd.f32 %v602, %v488
          %v604 = vsel %vm313, %v489, 0.0
          %v605 = vadd.f32 %v603, %v604
          %606 = vadd.xlane.f32.xlu0 %v605
          %v607 = vpop.xlane.xlu0 %606
          %v608 = vadd.f32 %v490, %v491
          %v609 = vadd.f32 %v608, %v492
          %v610 = vadd.f32 %v609, %v493
          %v611 = vadd.f32 %v610, %v494
          %v612 = vadd.f32 %v611, %v495
          %v613 = vsel %vm313, %v496, 0.0
          %v614 = vadd.f32 %v612, %v613
          %615 = vadd.xlane.f32.xlu0 %v614
          %v616 = vpop.xlane.xlu0 %615
          %v617 = vadd.f32 %v497, %v498
          %v618 = vadd.f32 %v617, %v499
          %v619 = vadd.f32 %v618, %v500
          %v620 = vadd.f32 %v619, %v501
          %v621 = vadd.f32 %v620, %v502
          %v622 = vsel %vm313, %v503, 0.0
          %v623 = vadd.f32 %v621, %v622
          %624 = vadd.xlane.f32.xlu0 %v623
          %v625 = vpop.xlane.xlu0 %624
          %v626 = vadd.f32 %v504, %v505
          %v627 = vadd.f32 %v626, %v506
          %v628 = vadd.f32 %v627, %v507
          %v629 = vadd.f32 %v628, %v508
          %v630 = vadd.f32 %v629, %v509
          %v631 = vsel %vm313, %v510, 0.0
          %v632 = vadd.f32 %v630, %v631
          %633 = vadd.xlane.f32.xlu0 %v632
          %v634 = vpop.xlane.xlu0 %633
          %v635 = vadd.f32 %v511, %v512
          %v636 = vadd.f32 %v635, %v513
          %v637 = vadd.f32 %v636, %v514
          %v638 = vadd.f32 %v637, %v515
          %v639 = vadd.f32 %v638, %v516
          %v640 = vsel %vm313, %v517, 0.0
          %v641 = vadd.f32 %v639, %v640
          %642 = vadd.xlane.f32.xlu0 %v641
          %v643 = vpop.xlane.xlu0 %642
          %v644 = vadd.f32 %v518, %v519
          %v645 = vadd.f32 %v644, %v520
          %v646 = vadd.f32 %v645, %v521
          %v647 = vadd.f32 %v646, %v522
          %v648 = vadd.f32 %v647, %v523
          %v649 = vsel %vm313, %v524, 0.0
          %v650 = vadd.f32 %v648, %v649
          %651 = vadd.xlane.f32.xlu0 %v650
          %v652 = vpop.xlane.xlu0 %651
          %v653 = vadd.f32 %v525, %v526
          %v654 = vadd.f32 %v653, %v527
          %v655 = vadd.f32 %v654, %v528
          %v656 = vadd.f32 %v655, %v529
          %v657 = vadd.f32 %v656, %v530
          %v658 = vsel %vm313, %v531, 0.0
          %v659 = vadd.f32 %v657, %v658
          %660 = vadd.xlane.f32.xlu0 %v659
          %v661 = vpop.xlane.xlu0 %660
          %v662 = vadd.f32 %v532, %v533
          %v663 = vadd.f32 %v662, %v534
          %v664 = vadd.f32 %v663, %v535
          %v665 = vadd.f32 %v664, %v536
          %v666 = vadd.f32 %v665, %v537
          %v667 = vsel %vm313, %v538, 0.0
          %v668 = vadd.f32 %v666, %v667
          %669 = vadd.xlane.f32.xlu0 %v668
          %v670 = vpop.xlane.xlu0 %669
          %v671 = vadd.f32 %v539, %v540
          %v672 = vadd.f32 %v671, %v541
          %v673 = vadd.f32 %v672, %v542
          %v674 = vadd.f32 %v673, %v543
          %v675 = vadd.f32 %v674, %v544
          %v676 = vsel %vm313, %v545, 0.0
          %v677 = vadd.f32 %v675, %v676
          %678 = vadd.xlane.f32.xlu0 %v677
          %v679 = vpop.xlane.xlu0 %678
          %v680 = vadd.f32 %v546, %v547
          %v681 = vadd.f32 %v680, %v548
          %v682 = vadd.f32 %v681, %v549
          %v683 = vadd.f32 %v682, %v550
          %v684 = vadd.f32 %v683, %v551
          %v685 = vsel %vm313, %v552, 0.0
          %v686 = vadd.f32 %v684, %v685
          %687 = vadd.xlane.f32.xlu0 %v686
          %v688 = vpop.xlane.xlu0 %687
          %v689 = vadd.f32 %v553, %v554
          %v690 = vadd.f32 %v689, %v555
          %v691 = vadd.f32 %v690, %v556
          %v692 = vadd.f32 %v691, %v557
          %v693 = vadd.f32 %v692, %v558
          %v694 = vsel %vm313, %v559, 0.0
          %v695 = vadd.f32 %v693, %v694
          %696 = vadd.xlane.f32.xlu0 %v695
          %v697 = vpop.xlane.xlu0 %696
          %v698 = vadd.f32 %v560, %v561
          %v699 = vadd.f32 %v698, %v562
          %v700 = vadd.f32 %v699, %v563
          %v701 = vadd.f32 %v700, %v564
          %v702 = vadd.f32 %v701, %v565
          %v703 = vsel %vm313, %v566, 0.0
          %v704 = vadd.f32 %v702, %v703
          %705 = vadd.xlane.f32.xlu0 %v704
          %v706 = vpop.xlane.xlu0 %705
          %v707 = vadd.f32 %v567, %v568
          %v708 = vadd.f32 %v707, %v569
          %v709 = vadd.f32 %v708, %v570
          %v710 = vadd.f32 %v709, %v571
          %v711 = vadd.f32 %v710, %v572
          %v712 = vsel %vm313, %v573, 0.0
          %v713 = vadd.f32 %v711, %v712
          %714 = vadd.xlane.f32.xlu0 %v713
          %v715 = vpop.xlane.xlu0 %714
          %v716 = vadd.f32 %v574, %v575
          %v717 = vadd.f32 %v716, %v576
          %v718 = vadd.f32 %v717, %v577
          %v719 = vadd.f32 %v718, %v578
          %v720 = vadd.f32 %v719, %v579
          %v721 = vsel %vm313, %v580, 0.0
          %v722 = vadd.f32 %v720, %v721
          %723 = vadd.xlane.f32.xlu0 %v722
          %v724 = vpop.xlane.xlu0 %723
          %v725 = vmul.f32 %v317, %v453
          %v726 = vmul.f32 %v326, %v454
          %v727 = vmul.f32 %v335, %v455
          %v728 = vmul.f32 %v344, %v456
          %v729 = vmul.f32 %v353, %v457
          %v730 = vmul.f32 %v362, %v458
          %v731 = vmul.f32 %v371, %v459
          %v732 = vmul.f32 %v380, %v460
          %v733 = vmul.f32 %v389, %v461
          %v734 = vmul.f32 %v398, %v462
          %v735 = vmul.f32 %v407, %v463
          %v736 = vmul.f32 %v416, %v464
          %v737 = vmul.f32 %v425, %v465
          %v738 = vmul.f32 %v434, %v466
          %v739 = vmul.f32 %v443, %v467
          %v740 = vmul.f32 %v452, %v468
          %v741 = vsub.f32 %v589, %v725
          %v742 = vsub.f32 %v598, %v726
          %v743 = vsub.f32 %v607, %v727
          %v744 = vsub.f32 %v616, %v728
          %v745 = vsub.f32 %v625, %v729
          %v746 = vsub.f32 %v634, %v730
          %v747 = vsub.f32 %v643, %v731
          %v748 = vsub.f32 %v652, %v732
          %v749 = vsub.f32 %v661, %v733
          %v750 = vsub.f32 %v670, %v734
          %v751 = vsub.f32 %v679, %v735
          %v752 = vsub.f32 %v688, %v736
          %v753 = vsub.f32 %v697, %v737
          %v754 = vsub.f32 %v706, %v738
          %v755 = vsub.f32 %v715, %v739
          %v756 = vsub.f32 %v724, %v740
          %v757 = vadd.f32 %v741, 1e-12
          %v758 = vadd.f32 %v742, 1e-12
          %v759 = vadd.f32 %v743, 1e-12
          %v760 = vadd.f32 %v744, 1e-12
          %v761 = vadd.f32 %v745, 1e-12
          %v762 = vadd.f32 %v746, 1e-12
          %v763 = vadd.f32 %v747, 1e-12
          %v764 = vadd.f32 %v748, 1e-12
          %v765 = vadd.f32 %v749, 1e-12
          %v766 = vadd.f32 %v750, 1e-12
          %v767 = vadd.f32 %v751, 1e-12
          %v768 = vadd.f32 %v752, 1e-12
          %v769 = vadd.f32 %v753, 1e-12
          %v770 = vadd.f32 %v754, 1e-12
          %v771 = vadd.f32 %v755, 1e-12
          %v772 = vadd.f32 %v756, 1e-12
          %v773 = vrsqrt.pop %v757
          %v774 = vrsqrt.pop %v758
          %v775 = vrsqrt.pop %v759
          %v776 = vrsqrt.pop %v760
          %v777 = vrsqrt.pop %v761
          %v778 = vrsqrt.pop %v762
          %v779 = vrsqrt.pop %v763
          %v780 = vrsqrt.pop %v764
          %v781 = vrsqrt.pop %v765
          %v782 = vrsqrt.pop %v766
          %v783 = vrsqrt.pop %v767
          %v784 = vrsqrt.pop %v768
          %v785 = vrsqrt.pop %v769
          %v786 = vrsqrt.pop %v770
          %v787 = vrsqrt.pop %v771
          %v788 = vrsqrt.pop %v772
          %v789 = vadd.f32 %v189, %v190
          %v790 = vadd.f32 %v789, %v191
          %v791 = vadd.f32 %v790, %v192
          %v792 = vadd.f32 %v791, %v193
          %v793 = vadd.f32 %v792, %v194
          %v794 = vsel %vm313, %v195, 0.0
          %v795 = vadd.f32 %v793, %v794
          %796 = vadd.xlane.f32.xlu0 %v795
          %v797 = vpop.xlane.xlu0 %796
          %v798 = vpack.c.bf16 %v189, %v189
          %v799 = vpack.c.bf16 %v190, %v190
          %v800 = vpack.c.bf16 %v191, %v191
          %v801 = vpack.c.bf16 %v192, %v192
          %v802 = vpack.c.bf16 %v193, %v193
          %v803 = vpack.c.bf16 %v194, %v194
          %v804 = vpack.c.bf16 %v195, %v195
          %v805 = vpack.c.bf16 %v203, %v196
          %v806 = vpack.c.bf16 %v204, %v197
          %v807 = vpack.c.bf16 %v205, %v198
          %v808 = vpack.c.bf16 %v206, %v199
          %v809 = vpack.c.bf16 %v207, %v200
          %v810 = vpack.c.bf16 %v208, %v201
          %v811 = vpack.c.bf16 %v209, %v202
          %v812 = vpack.c.bf16 %v217, %v210
          %v813 = vpack.c.bf16 %v218, %v211
          %v814 = vpack.c.bf16 %v219, %v212
          %v815 = vpack.c.bf16 %v220, %v213
          %v816 = vpack.c.bf16 %v221, %v214
          %v817 = vpack.c.bf16 %v222, %v215
          %v818 = vpack.c.bf16 %v223, %v216
          %v819 = vpack.c.bf16 %v231, %v224
          %v820 = vpack.c.bf16 %v232, %v225
          %v821 = vpack.c.bf16 %v233, %v226
          %v822 = vpack.c.bf16 %v234, %v227
          %v823 = vpack.c.bf16 %v235, %v228
          %v824 = vpack.c.bf16 %v236, %v229
          %v825 = vpack.c.bf16 %v237, %v230
          %v826 = vpack.c.bf16 %v245, %v238
          %v827 = vpack.c.bf16 %v246, %v239
          %v828 = vpack.c.bf16 %v247, %v240
          %v829 = vpack.c.bf16 %v248, %v241
          %v830 = vpack.c.bf16 %v249, %v242
          %v831 = vpack.c.bf16 %v250, %v243
          %v832 = vpack.c.bf16 %v251, %v244
          %v833 = vpack.c.bf16 %v259, %v252
          %v834 = vpack.c.bf16 %v260, %v253
          %v835 = vpack.c.bf16 %v261, %v254
          %v836 = vpack.c.bf16 %v262, %v255
          %v837 = vpack.c.bf16 %v263, %v256
          %v838 = vpack.c.bf16 %v264, %v257
          %v839 = vpack.c.bf16 %v265, %v258
          %v840 = vpack.c.bf16 %v273, %v266
          %v841 = vpack.c.bf16 %v274, %v267
          %v842 = vpack.c.bf16 %v275, %v268
          %v843 = vpack.c.bf16 %v276, %v269
          %v844 = vpack.c.bf16 %v277, %v270
          %v845 = vpack.c.bf16 %v278, %v271
          %v846 = vpack.c.bf16 %v279, %v272
          %v847 = vpack.c.bf16 %v287, %v280
          %v848 = vpack.c.bf16 %v288, %v281
          %v849 = vpack.c.bf16 %v289, %v282
          %v850 = vpack.c.bf16 %v290, %v283
          %v851 = vpack.c.bf16 %v291, %v284
          %v852 = vpack.c.bf16 %v292, %v285
          %v853 = vpack.c.bf16 %v293, %v286
          %v854 = vpack.c.bf16 %v301, %v294
          %v855 = vpack.c.bf16 %v302, %v295
          %v856 = vpack.c.bf16 %v303, %v296
          %v857 = vpack.c.bf16 %v304, %v297
          %v858 = vpack.c.bf16 %v305, %v298
          %v859 = vpack.c.bf16 %v306, %v299
          %v860 = vpack.c.bf16 %v307, %v300
          %v862 = vsel %vm313, %v804, 0
          %v865 = vsel %vm313, %v811, 0
          %v868 = vsel %vm313, %v818, 0
          %v871 = vsel %vm313, %v825, 0
          %v874 = vsel %vm313, %v832, 0
          %v877 = vsel %vm313, %v839, 0
          %v880 = vsel %vm313, %v846, 0
          %v883 = vsel %vm313, %v853, 0
          %v886 = vsel %vm313, %v860, 0
          %888 = vmatprep.subr.bf16.mxu0 %v855
          %889 = vmatpush1.bf16.xpose.msra.mxu0 %v854
          %890 = vmatprep.subr.bf16.mxu0 %v848
          %891 = vmatpush1.bf16.xpose.msra.mxu0 %v847
          %892 = vmatprep.subr.bf16.mxu0 %v841
          %893 = vmatpush1.bf16.xpose.msra.mxu0 %v840
          %894 = vmatprep.subr.bf16.mxu0 %v834
          %895 = vmatpush1.bf16.xpose.msra.mxu0 %v833
          %896 = vmatprep.subr.bf16.mxu0 %v827
          %897 = vmatpush1.bf16.xpose.msra.mxu0 %v826
          %898 = vmatprep.subr.bf16.mxu0 %v820
          %899 = vmatpush1.bf16.xpose.msra.mxu0 %v819
          %900 = vmatprep.subr.bf16.mxu0 %v813
          %901 = vmatpush1.bf16.xpose.msra.mxu0 %v812
          %902 = vmatprep.subr.bf16.mxu0 %v806
          %903 = vmatpush1.bf16.xpose.msra.mxu0 %v805
          %904 = vmatprep.subr.bf16.mxu0 0
          %905 = vmatpush2.bf16.xpose.msra.mxu0 0
          %906 = vmatprep.subr.bf16.mxu0 0
          %907 = vmatpush2.bf16.xpose.msra.mxu0 0
          %908 = vmatprep.subr.bf16.mxu0 0
          %909 = vmatpush2.bf16.xpose.msra.mxu0 0
          %910 = vmatprep.subr.bf16.mxu0 0
          %911 = vmatpush2.bf16.xpose.msra.mxu0 0
          %912 = vmatprep.subr.bf16.mxu0 0
          %913 = vmatpush2.bf16.xpose.msra.mxu0 0
          %914 = vmatprep.subr.bf16.mxu0 0
          %915 = vmatpush2.bf16.xpose.msra.mxu0 0
          %916 = vmatprep.subr.bf16.mxu0 0
          %917 = vmatpush2.bf16.xpose.msra.mxu0 0
          %918 = vmatprep.subr.bf16.mxu0 0
          %919 = vmatpush2.bf16.xpose.msra.mxu0 0
          %920 = vmatprep.mubr.bf16.mxu0 %v799
          %921 = vmatmul.mubr.bf16.gmra.mxu0 %v798
          %v922 = vpop.f32.mrf.mxu0
          %v923 = vadd.f32 0.0, %v922
          %v924 = vpop.f32.mrf.mxu0
          %v925 = vpop.f32.mrf.mxu0
          %v926 = vpop.f32.mrf.mxu0
          %927 = vdwg.mxu0
          %928 = vmatprep.subr.bf16.mxu0 %v857
          %929 = vmatpush1.bf16.xpose.msra.mxu0 %v856
          %930 = vmatprep.subr.bf16.mxu0 %v850
          %931 = vmatpush1.bf16.xpose.msra.mxu0 %v849
          %932 = vmatprep.subr.bf16.mxu0 %v843
          %933 = vmatpush1.bf16.xpose.msra.mxu0 %v842
          %934 = vmatprep.subr.bf16.mxu0 %v836
          %935 = vmatpush1.bf16.xpose.msra.mxu0 %v835
          %936 = vmatprep.subr.bf16.mxu0 %v829
          %937 = vmatpush1.bf16.xpose.msra.mxu0 %v828
          %938 = vmatprep.subr.bf16.mxu0 %v822
          %939 = vmatpush1.bf16.xpose.msra.mxu0 %v821
          %940 = vmatprep.subr.bf16.mxu0 %v815
          %941 = vmatpush1.bf16.xpose.msra.mxu0 %v814
          %942 = vmatprep.subr.bf16.mxu0 %v808
          %943 = vmatpush1.bf16.xpose.msra.mxu0 %v807
          %944 = vmatprep.subr.bf16.mxu0 0
          %945 = vmatpush2.bf16.xpose.msra.mxu0 0
          %946 = vmatprep.subr.bf16.mxu0 0
          %947 = vmatpush2.bf16.xpose.msra.mxu0 0
          %948 = vmatprep.subr.bf16.mxu0 0
          %949 = vmatpush2.bf16.xpose.msra.mxu0 0
          %950 = vmatprep.subr.bf16.mxu0 0
          %951 = vmatpush2.bf16.xpose.msra.mxu0 0
          %952 = vmatprep.subr.bf16.mxu0 0
          %953 = vmatpush2.bf16.xpose.msra.mxu0 0
          %954 = vmatprep.subr.bf16.mxu0 0
          %955 = vmatpush2.bf16.xpose.msra.mxu0 0
          %956 = vmatprep.subr.bf16.mxu0 0
          %957 = vmatpush2.bf16.xpose.msra.mxu0 0
          %958 = vmatprep.subr.bf16.mxu0 0
          %959 = vmatpush2.bf16.xpose.msra.mxu0 0
          %960 = vmatprep.mubr.bf16.mxu0 %v801
          %961 = vmatmul.mubr.bf16.gmra.mxu0 %v800
          %v962 = vpop.f32.mrf.mxu0
          %v963 = vadd.f32 %v923, %v962
          %v964 = vpop.f32.mrf.mxu0
          %v965 = vpop.f32.mrf.mxu0
          %v966 = vpop.f32.mrf.mxu0
          %967 = vdwg.mxu0
          %968 = vmatprep.subr.bf16.mxu0 %v859
          %969 = vmatpush1.bf16.xpose.msra.mxu0 %v858
          %970 = vmatprep.subr.bf16.mxu0 %v852
          %971 = vmatpush1.bf16.xpose.msra.mxu0 %v851
          %972 = vmatprep.subr.bf16.mxu0 %v845
          %973 = vmatpush1.bf16.xpose.msra.mxu0 %v844
          %974 = vmatprep.subr.bf16.mxu0 %v838
          %975 = vmatpush1.bf16.xpose.msra.mxu0 %v837
          %976 = vmatprep.subr.bf16.mxu0 %v831
          %977 = vmatpush1.bf16.xpose.msra.mxu0 %v830
          %978 = vmatprep.subr.bf16.mxu0 %v824
          %979 = vmatpush1.bf16.xpose.msra.mxu0 %v823
          %980 = vmatprep.subr.bf16.mxu0 %v817
          %981 = vmatpush1.bf16.xpose.msra.mxu0 %v816
          %982 = vmatprep.subr.bf16.mxu0 %v810
          %983 = vmatpush1.bf16.xpose.msra.mxu0 %v809
          %984 = vmatprep.subr.bf16.mxu0 0
          %985 = vmatpush2.bf16.xpose.msra.mxu0 0
          %986 = vmatprep.subr.bf16.mxu0 0
          %987 = vmatpush2.bf16.xpose.msra.mxu0 0
          %988 = vmatprep.subr.bf16.mxu0 0
          %989 = vmatpush2.bf16.xpose.msra.mxu0 0
          %990 = vmatprep.subr.bf16.mxu0 0
          %991 = vmatpush2.bf16.xpose.msra.mxu0 0
          %992 = vmatprep.subr.bf16.mxu0 0
          %993 = vmatpush2.bf16.xpose.msra.mxu0 0
          %994 = vmatprep.subr.bf16.mxu0 0
          %995 = vmatpush2.bf16.xpose.msra.mxu0 0
          %996 = vmatprep.subr.bf16.mxu0 0
          %997 = vmatpush2.bf16.xpose.msra.mxu0 0
          %998 = vmatprep.subr.bf16.mxu0 0
          %999 = vmatpush2.bf16.xpose.msra.mxu0 0
          %1000 = vmatprep.mubr.bf16.mxu0 %v803
          %1001 = vmatmul.mubr.bf16.gmra.mxu0 %v802
          %v1002 = vpop.f32.mrf.mxu0
          %v1003 = vadd.f32 %v963, %v1002
          %v1004 = vpop.f32.mrf.mxu0
          %v1005 = vpop.f32.mrf.mxu0
          %v1006 = vpop.f32.mrf.mxu0
          %1007 = vdwg.mxu0
          %1008 = vmatprep.subr.bf16.mxu0 0
          %1009 = vmatpush1.bf16.xpose.msra.mxu0 %v886
          %1010 = vmatprep.subr.bf16.mxu0 0
          %1011 = vmatpush1.bf16.xpose.msra.mxu0 %v883
          %1012 = vmatprep.subr.bf16.mxu0 0
          %1013 = vmatpush1.bf16.xpose.msra.mxu0 %v880
          %1014 = vmatprep.subr.bf16.mxu0 0
          %1015 = vmatpush1.bf16.xpose.msra.mxu0 %v877
          %1016 = vmatprep.subr.bf16.mxu0 0
          %1017 = vmatpush1.bf16.xpose.msra.mxu0 %v874
          %1018 = vmatprep.subr.bf16.mxu0 0
          %1019 = vmatpush1.bf16.xpose.msra.mxu0 %v871
          %1020 = vmatprep.subr.bf16.mxu0 0
          %1021 = vmatpush1.bf16.xpose.msra.mxu0 %v868
          %1022 = vmatprep.subr.bf16.mxu0 0
          %1023 = vmatpush1.bf16.xpose.msra.mxu0 %v865
          %1024 = vmatprep.subr.bf16.mxu0 0
          %1025 = vmatpush2.bf16.xpose.msra.mxu0 0
          %1026 = vmatprep.subr.bf16.mxu0 0
          %1027 = vmatpush2.bf16.xpose.msra.mxu0 0
          %1028 = vmatprep.subr.bf16.mxu0 0
          %1029 = vmatpush2.bf16.xpose.msra.mxu0 0
          %1030 = vmatprep.subr.bf16.mxu0 0
          %1031 = vmatpush2.bf16.xpose.msra.mxu0 0
          %1032 = vmatprep.subr.bf16.mxu0 0
          %1033 = vmatpush2.bf16.xpose.msra.mxu0 0
          %1034 = vmatprep.subr.bf16.mxu0 0
          %1035 = vmatpush2.bf16.xpose.msra.mxu0 0
          %1036 = vmatprep.subr.bf16.mxu0 0
          %1037 = vmatpush2.bf16.xpose.msra.mxu0 0
          %1038 = vmatprep.subr.bf16.mxu0 0
          %1039 = vmatpush2.bf16.xpose.msra.mxu0 0
          %1040 = vmatprep.mubr.bf16.mxu0 0
          %1041 = vmatmul.mubr.bf16.gmra.mxu0 %v862
          %v1042 = vpop.f32.mrf.mxu0
          %v1043 = vadd.f32 %v1003, %v1042
          %v1044 = vpop.f32.mrf.mxu0
          %v1045 = vpop.f32.mrf.mxu0
          %v1046 = vpop.f32.mrf.mxu0
          %1047 = vdwg.mxu0
          %1048 = vxpose.xlu0.b32.start [1/16] %v453, 128
          %1049 = vxpose.xlu0.b32.cont [2/16] %v454, 128
          %1050 = vxpose.xlu0.b32.cont [3/16] %v455, 128
          %1051 = vxpose.xlu0.b32.cont [4/16] %v456, 128
          %1052 = vxpose.xlu0.b32.cont [5/16] %v457, 128
          %1053 = vxpose.xlu0.b32.cont [6/16] %v458, 128
          %1054 = vxpose.xlu0.b32.cont [7/16] %v459, 128
          %1055 = vxpose.xlu0.b32.cont [8/16] %v460, 128
          %1056 = vxpose.xlu0.b32.cont [9/16] %v461, 128
          %1057 = vxpose.xlu0.b32.cont [10/16] %v462, 128
          %1058 = vxpose.xlu0.b32.cont [11/16] %v463, 128
          %1059 = vxpose.xlu0.b32.cont [12/16] %v464, 128
          %1060 = vxpose.xlu0.b32.cont [13/16] %v465, 128
          %1061 = vxpose.xlu0.b32.cont [14/16] %v466, 128
          %1062 = vxpose.xlu0.b32.cont [15/16] %v467, 128
          %1063 = vxpose.xlu0.b32.end [16/16] %v468, 128
          %v1064 = vpop.trf.xlu0
          %v1065 = vpop.trf.xlu0
          %v1066 = vpop.trf.xlu0
          %v1067 = vpop.trf.xlu0
          %v1068 = vpop.trf.xlu0
          %v1069 = vpop.trf.xlu0
          %v1070 = vpop.trf.xlu0
          %v1071 = vpop.trf.xlu0
          %v1072 = vpop.trf.xlu0
          %v1073 = vpop.trf.xlu0
          %v1074 = vpop.trf.xlu0
          %v1075 = vpop.trf.xlu0
          %v1076 = vpop.trf.xlu0
          %v1077 = vpop.trf.xlu0
          %v1078 = vpop.trf.xlu0
          %v1079 = vpop.trf.xlu0
          %v1080 = vlaneseq
          %v1081 = vshrl.u32 %v1080, 7
          %v1082 = vsub.s32 0, %v1081
          %v1083 = vrot.slane %v1064, %v1082
          %v1084 = vmul.f32 %v797, %v1083
          %v1085 = vsub.f32 %v1043, %v1084
          %1086 = vxpose.xlu0.b32.start [1/16] %v773, 128
          %1087 = vxpose.xlu0.b32.cont [2/16] %v774, 128
          %1088 = vxpose.xlu0.b32.cont [3/16] %v775, 128
          %1089 = vxpose.xlu0.b32.cont [4/16] %v776, 128
          %1090 = vxpose.xlu0.b32.cont [5/16] %v777, 128
          %1091 = vxpose.xlu0.b32.cont [6/16] %v778, 128
          %1092 = vxpose.xlu0.b32.cont [7/16] %v779, 128
          %1093 = vxpose.xlu0.b32.cont [8/16] %v780, 128
          %1094 = vxpose.xlu0.b32.cont [9/16] %v781, 128
          %1095 = vxpose.xlu0.b32.cont [10/16] %v782, 128
          %1096 = vxpose.xlu0.b32.cont [11/16] %v783, 128
          %1097 = vxpose.xlu0.b32.cont [12/16] %v784, 128
          %1098 = vxpose.xlu0.b32.cont [13/16] %v785, 128
          %1099 = vxpose.xlu0.b32.cont [14/16] %v786, 128
          %1100 = vxpose.xlu0.b32.cont [15/16] %v787, 128
          %1101 = vxpose.xlu0.b32.end [16/16] %v788, 128
          %v1102 = vpop.trf.xlu0
          %v1103 = vpop.trf.xlu0
          %v1104 = vpop.trf.xlu0
          %v1105 = vpop.trf.xlu0
          %v1106 = vpop.trf.xlu0
          %v1107 = vpop.trf.xlu0
          %v1108 = vpop.trf.xlu0
          %v1109 = vpop.trf.xlu0
          %v1110 = vpop.trf.xlu0
          %v1111 = vpop.trf.xlu0
          %v1112 = vpop.trf.xlu0
          %v1113 = vpop.trf.xlu0
          %v1114 = vpop.trf.xlu0
          %v1115 = vpop.trf.xlu0
          %v1116 = vpop.trf.xlu0
          %v1117 = vpop.trf.xlu0
          %v1118 = vlaneseq
          %v1119 = vshrl.u32 %v1118, 7
          %v1120 = vsub.s32 0, %v1119
          %v1121 = vrot.slane %v1102, %v1120
          %v1122 = vmul.f32 %v1085, %v1121
          %v1123 = vmax.f32 %v1122, 0.0
          %v1124 = vmul.f32 %v1123, 1.4142135
          %1125 = vst [vmem:[#allocation2] sm:$0xff] %v1124
        $region40: #{cwnnet_forward.1} parent=35 // pred_fallthru
          _
        %v1126 = vld [vmem:[%s183] sm:$0xff]
        %v1127 = vld [vmem:[%s183 + $0x8] sm:$0xff]
        %v1128 = vld [vmem:[%s183 + $0x10] sm:$0xff]
        %v1129 = vld [vmem:[%s183 + $0x18] sm:$0xff]
        %v1130 = vld [vmem:[%s183 + $0x20] sm:$0xff]
        %v1131 = vld [vmem:[%s183 + $0x28] sm:$0xff]
        %v1132 = vld [vmem:[%s183 + $0x30] sm:$0xff]
        %v1133 = vld [vmem:[%s183 + $0x38] sm:$0xff]
        %v1134 = vld [vmem:[%s183 + $0x40] sm:$0xff]
        %v1135 = vld [vmem:[%s183 + $0x48] sm:$0xff]
        %v1136 = vld [vmem:[%s183 + $0x50] sm:$0xff]
        %v1137 = vld [vmem:[%s183 + $0x58] sm:$0xff]
        %v1138 = vld [vmem:[%s183 + $0x60] sm:$0xff]
        %v1139 = vld [vmem:[%s183 + $0x68] sm:$0xff]
        %v1140 = vld [vmem:[%s183 + $0x70] sm:$0xff]
        %v1141 = vld [vmem:[%s183 + $0x78] sm:$0xff]
        %v1142 = vld [vmem:[#allocation2] sm:$0xff]
        %1143 = vadd.xlane.f32.xlu0 %v1126
        %v1144 = vpop.xlane.xlu0 %1143
        %1145 = vadd.xlane.f32.xlu0 %v1127
        %v1146 = vpop.xlane.xlu0 %1145
        %1147 = vadd.xlane.f32.xlu0 %v1128
        %v1148 = vpop.xlane.xlu0 %1147
        %1149 = vadd.xlane.f32.xlu0 %v1129
        %v1150 = vpop.xlane.xlu0 %1149
        %1151 = vadd.xlane.f32.xlu0 %v1130
        %v1152 = vpop.xlane.xlu0 %1151
        %1153 = vadd.xlane.f32.xlu0 %v1131
        %v1154 = vpop.xlane.xlu0 %1153
        %1155 = vadd.xlane.f32.xlu0 %v1132
        %v1156 = vpop.xlane.xlu0 %1155
        %1157 = vadd.xlane.f32.xlu0 %v1133
        %v1158 = vpop.xlane.xlu0 %1157
        %1159 = vadd.xlane.f32.xlu0 %v1134
        %v1160 = vpop.xlane.xlu0 %1159
        %1161 = vadd.xlane.f32.xlu0 %v1135
        %v1162 = vpop.xlane.xlu0 %1161
        %1163 = vadd.xlane.f32.xlu0 %v1136
        %v1164 = vpop.xlane.xlu0 %1163
        %1165 = vadd.xlane.f32.xlu0 %v1137
        %v1166 = vpop.xlane.xlu0 %1165
        %1167 = vadd.xlane.f32.xlu0 %v1138
        %v1168 = vpop.xlane.xlu0 %1167
        %1169 = vadd.xlane.f32.xlu0 %v1139
        %v1170 = vpop.xlane.xlu0 %1169
        %1171 = vadd.xlane.f32.xlu0 %v1140
        %v1172 = vpop.xlane.xlu0 %1171
        %1173 = vadd.xlane.f32.xlu0 %v1141
        %v1174 = vpop.xlane.xlu0 %1173
        %v1175 = vmul.f32 %v1144, 0.0078125
        %v1176 = vmul.f32 %v1146, 0.0078125
        %v1177 = vmul.f32 %v1148, 0.0078125
        %v1178 = vmul.f32 %v1150, 0.0078125
        %v1179 = vmul.f32 %v1152, 0.0078125
        %v1180 = vmul.f32 %v1154, 0.0078125
        %v1181 = vmul.f32 %v1156, 0.0078125
        %v1182 = vmul.f32 %v1158, 0.0078125
        %v1183 = vmul.f32 %v1160, 0.0078125
        %v1184 = vmul.f32 %v1162, 0.0078125
        %v1185 = vmul.f32 %v1164, 0.0078125
        %v1186 = vmul.f32 %v1166, 0.0078125
        %v1187 = vmul.f32 %v1168, 0.0078125
        %v1188 = vmul.f32 %v1170, 0.0078125
        %v1189 = vmul.f32 %v1172, 0.0078125
        %v1190 = vmul.f32 %v1174, 0.0078125
        %v1191 = vmul.f32 %v1126, %v1126
        %v1192 = vmul.f32 %v1127, %v1127
        %v1193 = vmul.f32 %v1128, %v1128
        %v1194 = vmul.f32 %v1129, %v1129
        %v1195 = vmul.f32 %v1130, %v1130
        %v1196 = vmul.f32 %v1131, %v1131
        %v1197 = vmul.f32 %v1132, %v1132
        %v1198 = vmul.f32 %v1133, %v1133
        %v1199 = vmul.f32 %v1134, %v1134
        %v1200 = vmul.f32 %v1135, %v1135
        %v1201 = vmul.f32 %v1136, %v1136
        %v1202 = vmul.f32 %v1137, %v1137
        %v1203 = vmul.f32 %v1138, %v1138
        %v1204 = vmul.f32 %v1139, %v1139
        %v1205 = vmul.f32 %v1140, %v1140
        %v1206 = vmul.f32 %v1141, %v1141
        %1207 = vadd.xlane.f32.xlu0 %v1191
        %v1208 = vpop.xlane.xlu0 %1207
        %1209 = vadd.xlane.f32.xlu0 %v1192
        %v1210 = vpop.xlane.xlu0 %1209
        %1211 = vadd.xlane.f32.xlu0 %v1193
        %v1212 = vpop.xlane.xlu0 %1211
        %1213 = vadd.xlane.f32.xlu0 %v1194
        %v1214 = vpop.xlane.xlu0 %1213
        %1215 = vadd.xlane.f32.xlu0 %v1195
        %v1216 = vpop.xlane.xlu0 %1215
        %1217 = vadd.xlane.f32.xlu0 %v1196
        %v1218 = vpop.xlane.xlu0 %1217
        %1219 = vadd.xlane.f32.xlu0 %v1197
        %v1220 = vpop.xlane.xlu0 %1219
        %1221 = vadd.xlane.f32.xlu0 %v1198
        %v1222 = vpop.xlane.xlu0 %1221
        %1223 = vadd.xlane.f32.xlu0 %v1199
        %v1224 = vpop.xlane.xlu0 %1223
        %1225 = vadd.xlane.f32.xlu0 %v1200
        %v1226 = vpop.xlane.xlu0 %1225
        %1227 = vadd.xlane.f32.xlu0 %v1201
        %v1228 = vpop.xlane.xlu0 %1227
        %1229 = vadd.xlane.f32.xlu0 %v1202
        %v1230 = vpop.xlane.xlu0 %1229
        %1231 = vadd.xlane.f32.xlu0 %v1203
        %v1232 = vpop.xlane.xlu0 %1231
        %1233 = vadd.xlane.f32.xlu0 %v1204
        %v1234 = vpop.xlane.xlu0 %1233
        %1235 = vadd.xlane.f32.xlu0 %v1205
        %v1236 = vpop.xlane.xlu0 %1235
        %1237 = vadd.xlane.f32.xlu0 %v1206
        %v1238 = vpop.xlane.xlu0 %1237
        %v1239 = vmul.f32 %v1144, %v1175
        %v1240 = vmul.f32 %v1146, %v1176
        %v1241 = vmul.f32 %v1148, %v1177
        %v1242 = vmul.f32 %v1150, %v1178
        %v1243 = vmul.f32 %v1152, %v1179
        %v1244 = vmul.f32 %v1154, %v1180
        %v1245 = vmul.f32 %v1156, %v1181
        %v1246 = vmul.f32 %v1158, %v1182
        %v1247 = vmul.f32 %v1160, %v1183
        %v1248 = vmul.f32 %v1162, %v1184
        %v1249 = vmul.f32 %v1164, %v1185
        %v1250 = vmul.f32 %v1166, %v1186
        %v1251 = vmul.f32 %v1168, %v1187
        %v1252 = vmul.f32 %v1170, %v1188
        %v1253 = vmul.f32 %v1172, %v1189
        %v1254 = vmul.f32 %v1174, %v1190
        %v1255 = vsub.f32 %v1208, %v1239
        %v1256 = vsub.f32 %v1210, %v1240
        %v1257 = vsub.f32 %v1212, %v1241
        %v1258 = vsub.f32 %v1214, %v1242
        %v1259 = vsub.f32 %v1216, %v1243
        %v1260 = vsub.f32 %v1218, %v1244
        %v1261 = vsub.f32 %v1220, %v1245
        %v1262 = vsub.f32 %v1222, %v1246
        %v1263 = vsub.f32 %v1224, %v1247
        %v1264 = vsub.f32 %v1226, %v1248
        %v1265 = vsub.f32 %v1228, %v1249
        %v1266 = vsub.f32 %v1230, %v1250
        %v1267 = vsub.f32 %v1232, %v1251
        %v1268 = vsub.f32 %v1234, %v1252
        %v1269 = vsub.f32 %v1236, %v1253
        %v1270 = vsub.f32 %v1238, %v1254
        %v1271 = vadd.f32 %v1255, 1e-12
        %v1272 = vadd.f32 %v1256, 1e-12
        %v1273 = vadd.f32 %v1257, 1e-12
        %v1274 = vadd.f32 %v1258, 1e-12
        %v1275 = vadd.f32 %v1259, 1e-12
        %v1276 = vadd.f32 %v1260, 1e-12
        %v1277 = vadd.f32 %v1261, 1e-12
        %v1278 = vadd.f32 %v1262, 1e-12
        %v1279 = vadd.f32 %v1263, 1e-12
        %v1280 = vadd.f32 %v1264, 1e-12
        %v1281 = vadd.f32 %v1265, 1e-12
        %v1282 = vadd.f32 %v1266, 1e-12
        %v1283 = vadd.f32 %v1267, 1e-12
        %v1284 = vadd.f32 %v1268, 1e-12
        %v1285 = vadd.f32 %v1269, 1e-12
        %v1286 = vadd.f32 %v1270, 1e-12
        %v1287 = vrsqrt.pop %v1271
        %v1288 = vrsqrt.pop %v1272
        %v1289 = vrsqrt.pop %v1273
        %v1290 = vrsqrt.pop %v1274
        %v1291 = vrsqrt.pop %v1275
        %v1292 = vrsqrt.pop %v1276
        %v1293 = vrsqrt.pop %v1277
        %v1294 = vrsqrt.pop %v1278
        %v1295 = vrsqrt.pop %v1279
        %v1296 = vrsqrt.pop %v1280
        %v1297 = vrsqrt.pop %v1281
        %v1298 = vrsqrt.pop %v1282
        %v1299 = vrsqrt.pop %v1283
        %v1300 = vrsqrt.pop %v1284
        %v1301 = vrsqrt.pop %v1285
        %v1302 = vrsqrt.pop %v1286
        %1303 = vadd.xlane.f32.xlu0 %v1142
        %v1304 = vpop.xlane.xlu0 %1303
        %v1305 = vpack.c.bf16 %v1142, %v1142
        %v1306 = vpack.c.bf16 %v1127, %v1126
        %v1307 = vpack.c.bf16 %v1129, %v1128
        %v1308 = vpack.c.bf16 %v1131, %v1130
        %v1309 = vpack.c.bf16 %v1133, %v1132
        %v1310 = vpack.c.bf16 %v1135, %v1134
        %v1311 = vpack.c.bf16 %v1137, %v1136
        %v1312 = vpack.c.bf16 %v1139, %v1138
        %v1313 = vpack.c.bf16 %v1141, %v1140
        %1314 = vmatprep.subr.bf16.mxu0 0
        %1315 = vmatpush1.bf16.xpose.msra.mxu0 %v1313
        %1316 = vmatprep.subr.bf16.mxu0 0
        %1317 = vmatpush1.bf16.xpose.msra.mxu0 %v1312
        %1318 = vmatprep.subr.bf16.mxu0 0
        %1319 = vmatpush1.bf16.xpose.msra.mxu0 %v1311
        %1320 = vmatprep.subr.bf16.mxu0 0
        %1321 = vmatpush1.bf16.xpose.msra.mxu0 %v1310
        %1322 = vmatprep.subr.bf16.mxu0 0
        %1323 = vmatpush1.bf16.xpose.msra.mxu0 %v1309
        %1324 = vmatprep.subr.bf16.mxu0 0
        %1325 = vmatpush1.bf16.xpose.msra.mxu0 %v1308
        %1326 = vmatprep.subr.bf16.mxu0 0
        %1327 = vmatpush1.bf16.xpose.msra.mxu0 %v1307
        %1328 = vmatprep.subr.bf16.mxu0 0
        %1329 = vmatpush1.bf16.xpose.msra.mxu0 %v1306
        %1330 = vmatprep.subr.bf16.mxu0 0
        %1331 = vmatpush2.bf16.xpose.msra.mxu0 0
        %1332 = vmatprep.subr.bf16.mxu0 0
        %1333 = vmatpush2.bf16.xpose.msra.mxu0 0
        %1334 = vmatprep.subr.bf16.mxu0 0
        %1335 = vmatpush2.bf16.xpose.msra.mxu0 0
        %1336 = vmatprep.subr.bf16.mxu0 0
        %1337 = vmatpush2.bf16.xpose.msra.mxu0 0
        %1338 = vmatprep.subr.bf16.mxu0 0
        %1339 = vmatpush2.bf16.xpose.msra.mxu0 0
        %1340 = vmatprep.subr.bf16.mxu0 0
        %1341 = vmatpush2.bf16.xpose.msra.mxu0 0
        %1342 = vmatprep.subr.bf16.mxu0 0
        %1343 = vmatpush2.bf16.xpose.msra.mxu0 0
        %1344 = vmatprep.subr.bf16.mxu0 0
        %1345 = vmatpush2.bf16.xpose.msra.mxu0 0
        %1346 = vmatprep.mubr.bf16.mxu0 0
        %1347 = vmatmul.mubr.bf16.gmra.mxu0 %v1305
        %v1348 = vpop.f32.mrf.mxu0
        %v1349 = vadd.f32 0.0, %v1348
        %v1350 = vpop.f32.mrf.mxu0
        %v1351 = vpop.f32.mrf.mxu0
        %v1352 = vpop.f32.mrf.mxu0
        %1353 = vdwg.mxu0
        %1354 = vxpose.xlu0.b32.start [1/16] %v1175, 128
        %1355 = vxpose.xlu0.b32.cont [2/16] %v1176, 128
        %1356 = vxpose.xlu0.b32.cont [3/16] %v1177, 128
        %1357 = vxpose.xlu0.b32.cont [4/16] %v1178, 128
        %1358 = vxpose.xlu0.b32.cont [5/16] %v1179, 128
        %1359 = vxpose.xlu0.b32.cont [6/16] %v1180, 128
        %1360 = vxpose.xlu0.b32.cont [7/16] %v1181, 128
        %1361 = vxpose.xlu0.b32.cont [8/16] %v1182, 128
        %1362 = vxpose.xlu0.b32.cont [9/16] %v1183, 128
        %1363 = vxpose.xlu0.b32.cont [10/16] %v1184, 128
        %1364 = vxpose.xlu0.b32.cont [11/16] %v1185, 128
        %1365 = vxpose.xlu0.b32.cont [12/16] %v1186, 128
        %1366 = vxpose.xlu0.b32.cont [13/16] %v1187, 128
        %1367 = vxpose.xlu0.b32.cont [14/16] %v1188, 128
        %1368 = vxpose.xlu0.b32.cont [15/16] %v1189, 128
        %1369 = vxpose.xlu0.b32.end [16/16] %v1190, 128
        %v1370 = vpop.trf.xlu0
        %v1371 = vpop.trf.xlu0
        %v1372 = vpop.trf.xlu0
        %v1373 = vpop.trf.xlu0
        %v1374 = vpop.trf.xlu0
        %v1375 = vpop.trf.xlu0
        %v1376 = vpop.trf.xlu0
        %v1377 = vpop.trf.xlu0
        %v1378 = vpop.trf.xlu0
        %v1379 = vpop.trf.xlu0
        %v1380 = vpop.trf.xlu0
        %v1381 = vpop.trf.xlu0
        %v1382 = vpop.trf.xlu0
        %v1383 = vpop.trf.xlu0
        %v1384 = vpop.trf.xlu0
        %v1385 = vpop.trf.xlu0
        %v1386 = vlaneseq
        %v1387 = vshrl.u32 %v1386, 7
        %v1388 = vsub.s32 0, %v1387
        %v1389 = vrot.slane %v1370, %v1388
        %v1390 = vmul.f32 %v1304, %v1389
        %v1391 = vsub.f32 %v1349, %v1390
        %1392 = vxpose.xlu0.b32.start [1/16] %v1287, 128
        %1393 = vxpose.xlu0.b32.cont [2/16] %v1288, 128
        %1394 = vxpose.xlu0.b32.cont [3/16] %v1289, 128
        %1395 = vxpose.xlu0.b32.cont [4/16] %v1290, 128
        %1396 = vxpose.xlu0.b32.cont [5/16] %v1291, 128
        %1397 = vxpose.xlu0.b32.cont [6/16] %v1292, 128
        %1398 = vxpose.xlu0.b32.cont [7/16] %v1293, 128
        %1399 = vxpose.xlu0.b32.cont [8/16] %v1294, 128
        %1400 = vxpose.xlu0.b32.cont [9/16] %v1295, 128
        %1401 = vxpose.xlu0.b32.cont [10/16] %v1296, 128
        %1402 = vxpose.xlu0.b32.cont [11/16] %v1297, 128
        %1403 = vxpose.xlu0.b32.cont [12/16] %v1298, 128
        %1404 = vxpose.xlu0.b32.cont [13/16] %v1299, 128
        %1405 = vxpose.xlu0.b32.cont [14/16] %v1300, 128
        %1406 = vxpose.xlu0.b32.cont [15/16] %v1301, 128
        %1407 = vxpose.xlu0.b32.end [16/16] %v1302, 128
        %v1408 = vpop.trf.xlu0
        %v1409 = vpop.trf.xlu0
        %v1410 = vpop.trf.xlu0
        %v1411 = vpop.trf.xlu0
        %v1412 = vpop.trf.xlu0
        %v1413 = vpop.trf.xlu0
        %v1414 = vpop.trf.xlu0
        %v1415 = vpop.trf.xlu0
        %v1416 = vpop.trf.xlu0
        %v1417 = vpop.trf.xlu0
        %v1418 = vpop.trf.xlu0
        %v1419 = vpop.trf.xlu0
        %v1420 = vpop.trf.xlu0
        %v1421 = vpop.trf.xlu0
        %v1422 = vpop.trf.xlu0
        %v1423 = vpop.trf.xlu0
        %v1424 = vlaneseq
        %v1425 = vshrl.u32 %v1424, 7
        %v1426 = vsub.s32 0, %v1425
        %v1427 = vrot.slane %v1408, %v1426
        %v1428 = vmul.f32 %v1391, %v1427
        %v1429 = vmax.f32 %v1428, 0.0
        %v1430 = vmul.f32 %v1429, 1.4142135
        %1431 = vst [vmem:[#allocation2] sm:$0xff] %v1430
        %p1432 = scmp.eq.s32.totalorder %s16, 2
        // Predicated region
        $region41: #{cwnnet_forward.1} parent=35 // pred_check
          %p1433 = pneg %p1432
        $region42: #{cwnnet_forward.1} parent=35 // pred_check_branch
          %1435 = sbr.rel (%p1433) target = $region44
        $region43: #{cwnnet_forward.1} parent=35 // pred_region
          %v1436 = vld [vmem:[%s3] sm:$0xff]
          %v1437 = vld [vmem:[%s3 + $0x8] sm:$0xff]
          %v1438 = vld [vmem:[%s3 + $0x10] sm:$0xff]
          %v1439 = vld [vmem:[%s3 + $0x18] sm:$0xff]
          %v1440 = vld [vmem:[%s3 + $0x20] sm:$0xff]
          %v1441 = vld [vmem:[%s3 + $0x28] sm:$0xff]
          %v1442 = vld [vmem:[%s3 + $0x30] sm:$0xff]
          %v1443 = vld [vmem:[%s3 + $0x38] sm:$0xff]
          %v1444 = vld [vmem:[%s3 + $0x40] sm:$0xff]
          %v1445 = vld [vmem:[%s3 + $0x48] sm:$0xff]
          %v1446 = vld [vmem:[%s3 + $0x50] sm:$0xff]
          %v1447 = vld [vmem:[%s3 + $0x58] sm:$0xff]
          %v1448 = vld [vmem:[%s3 + $0x60] sm:$0xff]
          %v1449 = vld [vmem:[%s3 + $0x68] sm:$0xff]
          %v1450 = vld [vmem:[%s3 + $0x70] sm:$0xff]
          %v1451 = vld [vmem:[%s3 + $0x78] sm:$0xff]
          %v1452 = vld [vmem:[#allocation2] sm:$0xff]
          %1453 = vadd.xlane.f32.xlu0 %v1436
          %v1454 = vpop.xlane.xlu0 %1453
          %1455 = vadd.xlane.f32.xlu0 %v1437
          %v1456 = vpop.xlane.xlu0 %1455
          %1457 = vadd.xlane.f32.xlu0 %v1438
          %v1458 = vpop.xlane.xlu0 %1457
          %1459 = vadd.xlane.f32.xlu0 %v1439
          %v1460 = vpop.xlane.xlu0 %1459
          %1461 = vadd.xlane.f32.xlu0 %v1440
          %v1462 = vpop.xlane.xlu0 %1461
          %1463 = vadd.xlane.f32.xlu0 %v1441
          %v1464 = vpop.xlane.xlu0 %1463
          %1465 = vadd.xlane.f32.xlu0 %v1442
          %v1466 = vpop.xlane.xlu0 %1465
          %1467 = vadd.xlane.f32.xlu0 %v1443
          %v1468 = vpop.xlane.xlu0 %1467
          %1469 = vadd.xlane.f32.xlu0 %v1444
          %v1470 = vpop.xlane.xlu0 %1469
          %1471 = vadd.xlane.f32.xlu0 %v1445
          %v1472 = vpop.xlane.xlu0 %1471
          %1473 = vadd.xlane.f32.xlu0 %v1446
          %v1474 = vpop.xlane.xlu0 %1473
          %1475 = vadd.xlane.f32.xlu0 %v1447
          %v1476 = vpop.xlane.xlu0 %1475
          %1477 = vadd.xlane.f32.xlu0 %v1448
          %v1478 = vpop.xlane.xlu0 %1477
          %1479 = vadd.xlane.f32.xlu0 %v1449
          %v1480 = vpop.xlane.xlu0 %1479
          %1481 = vadd.xlane.f32.xlu0 %v1450
          %v1482 = vpop.xlane.xlu0 %1481
          %1483 = vadd.xlane.f32.xlu0 %v1451
          %v1484 = vpop.xlane.xlu0 %1483
          %v1485 = vmul.f32 %v1454, 0.0078125
          %v1486 = vmul.f32 %v1456, 0.0078125
          %v1487 = vmul.f32 %v1458, 0.0078125
          %v1488 = vmul.f32 %v1460, 0.0078125
          %v1489 = vmul.f32 %v1462, 0.0078125
          %v1490 = vmul.f32 %v1464, 0.0078125
          %v1491 = vmul.f32 %v1466, 0.0078125
          %v1492 = vmul.f32 %v1468, 0.0078125
          %v1493 = vmul.f32 %v1470, 0.0078125
          %v1494 = vmul.f32 %v1472, 0.0078125
          %v1495 = vmul.f32 %v1474, 0.0078125
          %v1496 = vmul.f32 %v1476, 0.0078125
          %v1497 = vmul.f32 %v1478, 0.0078125
          %v1498 = vmul.f32 %v1480, 0.0078125
          %v1499 = vmul.f32 %v1482, 0.0078125
          %v1500 = vmul.f32 %v1484, 0.0078125
          %v1501 = vmul.f32 %v1436, %v1436
          %v1502 = vmul.f32 %v1437, %v1437
          %v1503 = vmul.f32 %v1438, %v1438
          %v1504 = vmul.f32 %v1439, %v1439
          %v1505 = vmul.f32 %v1440, %v1440
          %v1506 = vmul.f32 %v1441, %v1441
          %v1507 = vmul.f32 %v1442, %v1442
          %v1508 = vmul.f32 %v1443, %v1443
          %v1509 = vmul.f32 %v1444, %v1444
          %v1510 = vmul.f32 %v1445, %v1445
          %v1511 = vmul.f32 %v1446, %v1446
          %v1512 = vmul.f32 %v1447, %v1447
          %v1513 = vmul.f32 %v1448, %v1448
          %v1514 = vmul.f32 %v1449, %v1449
          %v1515 = vmul.f32 %v1450, %v1450
          %v1516 = vmul.f32 %v1451, %v1451
          %1517 = vadd.xlane.f32.xlu0 %v1501
          %v1518 = vpop.xlane.xlu0 %1517
          %1519 = vadd.xlane.f32.xlu0 %v1502
          %v1520 = vpop.xlane.xlu0 %1519
          %1521 = vadd.xlane.f32.xlu0 %v1503
          %v1522 = vpop.xlane.xlu0 %1521
          %1523 = vadd.xlane.f32.xlu0 %v1504
          %v1524 = vpop.xlane.xlu0 %1523
          %1525 = vadd.xlane.f32.xlu0 %v1505
          %v1526 = vpop.xlane.xlu0 %1525
          %1527 = vadd.xlane.f32.xlu0 %v1506
          %v1528 = vpop.xlane.xlu0 %1527
          %1529 = vadd.xlane.f32.xlu0 %v1507
          %v1530 = vpop.xlane.xlu0 %1529
          %1531 = vadd.xlane.f32.xlu0 %v1508
          %v1532 = vpop.xlane.xlu0 %1531
          %1533 = vadd.xlane.f32.xlu0 %v1509
          %v1534 = vpop.xlane.xlu0 %1533
          %1535 = vadd.xlane.f32.xlu0 %v1510
          %v1536 = vpop.xlane.xlu0 %1535
          %1537 = vadd.xlane.f32.xlu0 %v1511
          %v1538 = vpop.xlane.xlu0 %1537
          %1539 = vadd.xlane.f32.xlu0 %v1512
          %v1540 = vpop.xlane.xlu0 %1539
          %1541 = vadd.xlane.f32.xlu0 %v1513
          %v1542 = vpop.xlane.xlu0 %1541
          %1543 = vadd.xlane.f32.xlu0 %v1514
          %v1544 = vpop.xlane.xlu0 %1543
          %1545 = vadd.xlane.f32.xlu0 %v1515
          %v1546 = vpop.xlane.xlu0 %1545
          %1547 = vadd.xlane.f32.xlu0 %v1516
          %v1548 = vpop.xlane.xlu0 %1547
          %v1549 = vmul.f32 %v1454, %v1485
          %v1550 = vmul.f32 %v1456, %v1486
          %v1551 = vmul.f32 %v1458, %v1487
          %v1552 = vmul.f32 %v1460, %v1488
          %v1553 = vmul.f32 %v1462, %v1489
          %v1554 = vmul.f32 %v1464, %v1490
          %v1555 = vmul.f32 %v1466, %v1491
          %v1556 = vmul.f32 %v1468, %v1492
          %v1557 = vmul.f32 %v1470, %v1493
          %v1558 = vmul.f32 %v1472, %v1494
          %v1559 = vmul.f32 %v1474, %v1495
          %v1560 = vmul.f32 %v1476, %v1496
          %v1561 = vmul.f32 %v1478, %v1497
          %v1562 = vmul.f32 %v1480, %v1498
          %v1563 = vmul.f32 %v1482, %v1499
          %v1564 = vmul.f32 %v1484, %v1500
          %v1565 = vsub.f32 %v1518, %v1549
          %v1566 = vsub.f32 %v1520, %v1550
          %v1567 = vsub.f32 %v1522, %v1551
          %v1568 = vsub.f32 %v1524, %v1552
          %v1569 = vsub.f32 %v1526, %v1553
          %v1570 = vsub.f32 %v1528, %v1554
          %v1571 = vsub.f32 %v1530, %v1555
          %v1572 = vsub.f32 %v1532, %v1556
          %v1573 = vsub.f32 %v1534, %v1557
          %v1574 = vsub.f32 %v1536, %v1558
          %v1575 = vsub.f32 %v1538, %v1559
          %v1576 = vsub.f32 %v1540, %v1560
          %v1577 = vsub.f32 %v1542, %v1561
          %v1578 = vsub.f32 %v1544, %v1562
          %v1579 = vsub.f32 %v1546, %v1563
          %v1580 = vsub.f32 %v1548, %v1564
          %v1581 = vadd.f32 %v1565, 1e-12
          %v1582 = vadd.f32 %v1566, 1e-12
          %v1583 = vadd.f32 %v1567, 1e-12
          %v1584 = vadd.f32 %v1568, 1e-12
          %v1585 = vadd.f32 %v1569, 1e-12
          %v1586 = vadd.f32 %v1570, 1e-12
          %v1587 = vadd.f32 %v1571, 1e-12
          %v1588 = vadd.f32 %v1572, 1e-12
          %v1589 = vadd.f32 %v1573, 1e-12
          %v1590 = vadd.f32 %v1574, 1e-12
          %v1591 = vadd.f32 %v1575, 1e-12
          %v1592 = vadd.f32 %v1576, 1e-12
          %v1593 = vadd.f32 %v1577, 1e-12
          %v1594 = vadd.f32 %v1578, 1e-12
          %v1595 = vadd.f32 %v1579, 1e-12
          %v1596 = vadd.f32 %v1580, 1e-12
          %v1597 = vrsqrt.pop %v1581
          %v1598 = vrsqrt.pop %v1582
          %v1599 = vrsqrt.pop %v1583
          %v1600 = vrsqrt.pop %v1584
          %v1601 = vrsqrt.pop %v1585
          %v1602 = vrsqrt.pop %v1586
          %v1603 = vrsqrt.pop %v1587
          %v1604 = vrsqrt.pop %v1588
          %v1605 = vrsqrt.pop %v1589
          %v1606 = vrsqrt.pop %v1590
          %v1607 = vrsqrt.pop %v1591
          %v1608 = vrsqrt.pop %v1592
          %v1609 = vrsqrt.pop %v1593
          %v1610 = vrsqrt.pop %v1594
          %v1611 = vrsqrt.pop %v1595
          %v1612 = vrsqrt.pop %v1596
          %1613 = vadd.xlane.f32.xlu0 %v1452
          %v1614 = vpop.xlane.xlu0 %1613
          %v1615 = vpack.c.bf16 %v1452, %v1452
          %v1616 = vpack.c.bf16 %v1437, %v1436
          %v1617 = vpack.c.bf16 %v1439, %v1438
          %v1618 = vpack.c.bf16 %v1441, %v1440
          %v1619 = vpack.c.bf16 %v1443, %v1442
          %v1620 = vpack.c.bf16 %v1445, %v1444
          %v1621 = vpack.c.bf16 %v1447, %v1446
          %v1622 = vpack.c.bf16 %v1449, %v1448
          %v1623 = vpack.c.bf16 %v1451, %v1450
          %1624 = vmatprep.subr.bf16.mxu0 0
          %1625 = vmatpush1.bf16.xpose.msra.mxu0 %v1623
          %1626 = vmatprep.subr.bf16.mxu0 0
          %1627 = vmatpush1.bf16.xpose.msra.mxu0 %v1622
          %1628 = vmatprep.subr.bf16.mxu0 0
          %1629 = vmatpush1.bf16.xpose.msra.mxu0 %v1621
          %1630 = vmatprep.subr.bf16.mxu0 0
          %1631 = vmatpush1.bf16.xpose.msra.mxu0 %v1620
          %1632 = vmatprep.subr.bf16.mxu0 0
          %1633 = vmatpush1.bf16.xpose.msra.mxu0 %v1619
          %1634 = vmatprep.subr.bf16.mxu0 0
          %1635 = vmatpush1.bf16.xpose.msra.mxu0 %v1618
          %1636 = vmatprep.subr.bf16.mxu0 0
          %1637 = vmatpush1.bf16.xpose.msra.mxu0 %v1617
          %1638 = vmatprep.subr.bf16.mxu0 0
          %1639 = vmatpush1.bf16.xpose.msra.mxu0 %v1616
          %1640 = vmatprep.subr.bf16.mxu0 0
          %1641 = vmatpush2.bf16.xpose.msra.mxu0 0
          %1642 = vmatprep.subr.bf16.mxu0 0
          %1643 = vmatpush2.bf16.xpose.msra.mxu0 0
          %1644 = vmatprep.subr.bf16.mxu0 0
          %1645 = vmatpush2.bf16.xpose.msra.mxu0 0
          %1646 = vmatprep.subr.bf16.mxu0 0
          %1647 = vmatpush2.bf16.xpose.msra.mxu0 0
          %1648 = vmatprep.subr.bf16.mxu0 0
          %1649 = vmatpush2.bf16.xpose.msra.mxu0 0
          %1650 = vmatprep.subr.bf16.mxu0 0
          %1651 = vmatpush2.bf16.xpose.msra.mxu0 0
          %1652 = vmatprep.subr.bf16.mxu0 0
          %1653 = vmatpush2.bf16.xpose.msra.mxu0 0
          %1654 = vmatprep.subr.bf16.mxu0 0
          %1655 = vmatpush2.bf16.xpose.msra.mxu0 0
          %1656 = vmatprep.mubr.bf16.mxu0 0
          %1657 = vmatmul.mubr.bf16.gmra.mxu0 %v1615
          %v1658 = vpop.f32.mrf.mxu0
          %v1659 = vadd.f32 0.0, %v1658
          %v1660 = vpop.f32.mrf.mxu0
          %v1661 = vpop.f32.mrf.mxu0
          %v1662 = vpop.f32.mrf.mxu0
          %1663 = vdwg.mxu0
          %1664 = vxpose.xlu0.b32.start [1/16] %v1485, 128
          %1665 = vxpose.xlu0.b32.cont [2/16] %v1486, 128
          %1666 = vxpose.xlu0.b32.cont [3/16] %v1487, 128
          %1667 = vxpose.xlu0.b32.cont [4/16] %v1488, 128
          %1668 = vxpose.xlu0.b32.cont [5/16] %v1489, 128
          %1669 = vxpose.xlu0.b32.cont [6/16] %v1490, 128
          %1670 = vxpose.xlu0.b32.cont [7/16] %v1491, 128
          %1671 = vxpose.xlu0.b32.cont [8/16] %v1492, 128
          %1672 = vxpose.xlu0.b32.cont [9/16] %v1493, 128
          %1673 = vxpose.xlu0.b32.cont [10/16] %v1494, 128
          %1674 = vxpose.xlu0.b32.cont [11/16] %v1495, 128
          %1675 = vxpose.xlu0.b32.cont [12/16] %v1496, 128
          %1676 = vxpose.xlu0.b32.cont [13/16] %v1497, 128
          %1677 = vxpose.xlu0.b32.cont [14/16] %v1498, 128
          %1678 = vxpose.xlu0.b32.cont [15/16] %v1499, 128
          %1679 = vxpose.xlu0.b32.end [16/16] %v1500, 128
          %v1680 = vpop.trf.xlu0
          %v1681 = vpop.trf.xlu0
          %v1682 = vpop.trf.xlu0
          %v1683 = vpop.trf.xlu0
          %v1684 = vpop.trf.xlu0
          %v1685 = vpop.trf.xlu0
          %v1686 = vpop.trf.xlu0
          %v1687 = vpop.trf.xlu0
          %v1688 = vpop.trf.xlu0
          %v1689 = vpop.trf.xlu0
          %v1690 = vpop.trf.xlu0
          %v1691 = vpop.trf.xlu0
          %v1692 = vpop.trf.xlu0
          %v1693 = vpop.trf.xlu0
          %v1694 = vpop.trf.xlu0
          %v1695 = vpop.trf.xlu0
          %v1696 = vlaneseq
          %v1697 = vshrl.u32 %v1696, 7
          %v1698 = vsub.s32 0, %v1697
          %v1699 = vrot.slane %v1680, %v1698
          %v1700 = vmul.f32 %v1614, %v1699
          %v1701 = vsub.f32 %v1659, %v1700
          %1702 = vxpose.xlu0.b32.start [1/16] %v1597, 128
          %1703 = vxpose.xlu0.b32.cont [2/16] %v1598, 128
          %1704 = vxpose.xlu0.b32.cont [3/16] %v1599, 128
          %1705 = vxpose.xlu0.b32.cont [4/16] %v1600, 128
          %1706 = vxpose.xlu0.b32.cont [5/16] %v1601, 128
          %1707 = vxpose.xlu0.b32.cont [6/16] %v1602, 128
          %1708 = vxpose.xlu0.b32.cont [7/16] %v1603, 128
          %1709 = vxpose.xlu0.b32.cont [8/16] %v1604, 128
          %1710 = vxpose.xlu0.b32.cont [9/16] %v1605, 128
          %1711 = vxpose.xlu0.b32.cont [10/16] %v1606, 128
          %1712 = vxpose.xlu0.b32.cont [11/16] %v1607, 128
          %1713 = vxpose.xlu0.b32.cont [12/16] %v1608, 128
          %1714 = vxpose.xlu0.b32.cont [13/16] %v1609, 128
          %1715 = vxpose.xlu0.b32.cont [14/16] %v1610, 128
          %1716 = vxpose.xlu0.b32.cont [15/16] %v1611, 128
          %1717 = vxpose.xlu0.b32.end [16/16] %v1612, 128
          %v1718 = vpop.trf.xlu0
          %v1719 = vpop.trf.xlu0
          %v1720 = vpop.trf.xlu0
          %v1721 = vpop.trf.xlu0
          %v1722 = vpop.trf.xlu0
          %v1723 = vpop.trf.xlu0
          %v1724 = vpop.trf.xlu0
          %v1725 = vpop.trf.xlu0
          %v1726 = vpop.trf.xlu0
          %v1727 = vpop.trf.xlu0
          %v1728 = vpop.trf.xlu0
          %v1729 = vpop.trf.xlu0
          %v1730 = vpop.trf.xlu0
          %v1731 = vpop.trf.xlu0
          %v1732 = vpop.trf.xlu0
          %v1733 = vpop.trf.xlu0
          %v1734 = vlaneseq
          %v1735 = vshrl.u32 %v1734, 7
          %v1736 = vsub.s32 0, %v1735
          %v1737 = vrot.slane %v1718, %v1736
          %v1738 = vmul.f32 %v1701, %v1737
          %1739 = vst [vmem:[#allocation3] sm:$0xff] %v1738
        $region44: #{cwnnet_forward.1} parent=35 // pred_fallthru
          _
        // Predicated region
        $region45: #{cwnnet_forward.1} parent=35 // pred_check
          %p1740 = pneg %p118
        $region46: #{cwnnet_forward.1} parent=35 // pred_check_branch
          %1742 = sbr.rel (%p1740) target = $region48
        $region47: #{cwnnet_forward.1} parent=35 // pred_region
          %s1744 = ssub.s32 128, 128
          %1745 = vsyncadd [#allocation4], %s1744
          %s1747 = sshll.u32 [#allocation3], 4
          %s1748 = int_to_ptr.vmem [resolvable:$true] %s1747
          %1750 = dma.vmem_to_hbm [thread:$0]  %s1748, 128, %s4, [#allocation4]
        $region48: #{cwnnet_forward.1} parent=35 // pred_fallthru
          _
        // Predicated region
        $region49: #{cwnnet_forward.1} parent=35 // pred_check
          %p1751 = pneg %p118
        $region50: #{cwnnet_forward.1} parent=35 // pred_check_branch
          %1753 = sbr.rel (%p1751) target = $region52
        $region51: #{cwnnet_forward.1} parent=35 // pred_region
          %1754 = dma.done [#allocation4], 128
        $region52: #{cwnnet_forward.1} parent=35 // pred_fallthru
          _
      $region36: #{cwnnet_forward.1} parent=5 // pred_fallthru
        _
      %p1755 = scmp.le.s32.totalorder 2, %s11
      // Predicated region
      $region53: #{cwnnet_forward.1} parent=5 // pred_check
        %p1756 = pneg %p1755
      $region54: #{cwnnet_forward.1} parent=5 // pred_check_branch
        %1758 = sbr.rel (%p1756) target = $region56
      $region55: #{cwnnet_forward.1} parent=5 // pred_region
        %s1759 = ssub.s32 %s11, 2
      $region56: #{cwnnet_forward.1} parent=5 // pred_fallthru
        _
    $region6: #{cwnnet_forward.1} parent=1 // loop_footer
      %s15 = sadd.s32 1, %s11
    $region7: #{cwnnet_forward.1} parent=1 // loop_footer_branch
      %10 = sbr.rel target = $region3
    $region8: #{cwnnet_forward.1} parent=1 // loop_exit
      _
    %1760 = vsyncpa [#allocation4], 1
    %s1761 = scalar_lea.sflag [#allocation4], 1
    %1762 = vsyncpa %s1761, 1

</llo_original>
